<compile_context>
chip_gen: v7x
topology: tpu7x:2x2x1
jax: 0.10.0
libtpu: 0.0.40
codegen_flags: <defaults>
</compile_context>

<pallas_src>
import jax
import jax.numpy as jnp
from jax.experimental import pallas as pl
from jax.experimental.pallas import tpu as pltpu

EPS = 1e-5
H = 256            # hidden width of the head
M = 32             # fc5 output width
M_PAD = 128        # fc5 width padded to a full lane group
F32 = jnp.float32
BF16 = jnp.bfloat16


def _round_up(x, m):
    return (x + m - 1) // m * m


def _vmem_limit_bytes():
    """Per-generation scoped-VMEM budget (leave headroom below physical).

    v5e/v6e: 128 MiB physical -> ~112 MiB; v7x: 64 MiB physical -> ~56 MiB.
    Conservative 56 MiB fallback if the hardware query is unavailable.
    """
    try:
        cap = pltpu.get_tpu_info().vmem_capacity_bytes
    except Exception:
        cap = 64 * 1024 * 1024
    return int(min(cap - 8 * 1024 * 1024, 112 * 1024 * 1024))


def _split_dims(dim):
    """Split the fc1 input dim into (MXU part, broadcast remainder column)."""
    d_main = (dim // 128) * 128
    rem = dim - d_main
    assert d_main >= 128 and rem <= 1, (
        "fc1 split path assumes dim = k*128 + {0,1}; ResPair_Distance uses 257")
    return d_main, rem


# ---------------------------------------------------------------------------
# Kernels
# ---------------------------------------------------------------------------
def _bn_train(h, gamma, beta):
    """BatchNorm1d, training mode, fused to a single scale/shift.

    Two-pass (h-mu)^2 variance (numerically safer than E[h^2]-mu^2);
    gamma*rsqrt goes to the EUP; apply is one VPU multiply-add.
    """
    mu = jnp.mean(h, axis=0, keepdims=True)
    var = jnp.mean(jnp.square(h - mu), axis=0, keepdims=True)
    scale = gamma * jax.lax.rsqrt(var + EPS)
    shift = beta - mu * scale
    return h * scale + shift


def _train_kernel(x_ref, xlast_ref, w1_ref, w234_ref, w5_ref, vecs_ref, o_ref):
    """Whole-batch forward with training-mode BatchNorm (batch statistics).

    x_ref    : [N, Dm]       bf16  (first Dm = 128*floor(dim/128) input cols)
    xlast_ref: [N, 1]        f32   (remaining input column, or zeros)
    w1_ref   : [Dm, 256]     bf16
    w234_ref : [3, 256, 256] bf16
    w5_ref   : [256, 128]    bf16  (cols 32..127 zero)
    vecs_ref : [24, 256]     f32   (see pack_train_params for the row layout)
    o_ref    : [N, 1]        f32
    """
    v = vecs_ref

    # fc1 -> bn1 -> relu.  The 257th input column is a VPU broadcast
    # multiply-add instead of padding the matmul K-dim from 257 to 384.
    h = (jnp.dot(x_ref[...], w1_ref[...], preferred_element_type=F32)
         + xlast_ref[...] * v[0:1, :] + v[1:2, :])
    h = jnp.maximum(_bn_train(h, v[2:3, :], v[3:4, :]), 0.0)
    hb = h.astype(BF16)      # keep the inter-layer activation in bf16 (VMEM)

    # fc2..fc4 : ResLinear(256) = relu(bn(fc(h)) + h)
    for i in range(3):
        r = 4 + 3 * i
        t = jnp.dot(hb, w234_ref[i], preferred_element_type=F32) + v[r:r + 1, :]
        t = _bn_train(t, v[r + 1:r + 2, :], v[r + 2:r + 3, :])
        hb = jnp.maximum(t + hb.astype(F32), 0.0).astype(BF16)

    # fc5 -> bn5 -> relu (lane-dense 128-wide output; padded cols stay 0)
    h5 = jnp.dot(hb, w5_ref[...], preferred_element_type=F32) + v[13:14, :M_PAD]
    h5 = jnp.maximum(_bn_train(h5, v[14:15, :M_PAD], v[15:16, :M_PAD]), 0.0)

    # fc6 (32 -> 1) -> relu as a VPU reduction (avoids a 1-lane MXU result)
    o = jnp.sum(h5 * v[16:17, :M_PAD], axis=-1, keepdims=True) + v[17:18, 0:1]
    o_ref[...] = jnp.maximum(o, 0.0).astype(o_ref.dtype)


def _eval_kernel(x_ref, xlast_ref, w1_ref, w234_ref, w5_ref, vecs_ref, o_ref):
    """Per-tile forward with eval-mode BatchNorm folded into the Linears."""
    v = vecs_ref

    h = jnp.maximum(
        jnp.dot(x_ref[...], w1_ref[...], preferred_element_type=F32)
        + xlast_ref[...] * v[0:1, :] + v[1:2, :], 0.0)
    for i in range(3):
        t = jnp.dot(h.astype(BF16), w234_ref[i],
                    preferred_element_type=F32) + v[2 + i:3 + i, :]
        h = jnp.maximum(t + h, 0.0)                     # ResLinear residual
    h5 = jnp.maximum(
        jnp.dot(h.astype(BF16), w5_ref[...],
                preferred_element_type=F32) + v[5:6, :M_PAD], 0.0)
    o = jnp.sum(h5 * v[6:7, :M_PAD], axis=-1, keepdims=True) + v[7:8, 0:1]
    # Width-1 output column lowers to masked stores; negligible at
    # tile_n >= 1024 (store bytes << the tile's 5 MXU matmuls).
    o_ref[...] = jnp.maximum(o, 0.0).astype(o_ref.dtype)


# ---------------------------------------------------------------------------
# One-time parameter packing (hoisted out of the per-call path)
# ---------------------------------------------------------------------------
def _pack_rows(rows, width=H):
    """Pack 1-D vectors into one [rows_padded_to_8, width] f32 array."""
    n = _round_up(len(rows), 8)
    out = jnp.zeros((n, width), F32)
    for i, r in enumerate(rows):
        r = jnp.asarray(r, F32).reshape(-1)
        out = out.at[i, :r.shape[0]].set(r)
    return out


def _fold_bn(w, b, g, be, rm, rv):
    """Fold eval-mode BatchNorm1d into the preceding Linear: y = x @ W' + b'."""
    s = g * jax.lax.rsqrt(rv + EPS)
    return w * s[None, :], b * s + (be - rm * s)


def pack_train_params(p, dim):
    """Pack / cast the head parameters for the training-mode kernel.

    vecs rows: 0 w1_last, 1 b1, 2 g1, 3 be1, 4..12 (b,g,be) x fc2..fc4,
               13 b5, 14 g5, 15 be5, 16 w6, 17 b6  (padded rows/cols are 0).
    """
    d_main, rem = _split_dims(dim)
    w1 = jnp.asarray(p["w1"], F32)
    w1_last = w1[d_main, :] if rem else jnp.zeros((H,), F32)
    return dict(
        w1=w1[:d_main].astype(BF16),
        w234=jnp.stack([p["w2"], p["w3"], p["w4"]]).astype(BF16),
        w5=jnp.pad(jnp.asarray(p["w5"], F32),
                   ((0, 0), (0, M_PAD - M))).astype(BF16),
        vecs=_pack_rows(
            [w1_last,
             p["b1"], p["g1"], p["be1"],
             p["b2"], p["g2"], p["be2"],
             p["b3"], p["g3"], p["be3"],
             p["b4"], p["g4"], p["be4"],
             p["b5"], p["g5"], p["be5"],
             p["w6"][:, 0], p["b6"]]))


def pack_eval_params(p, dim):
    """Fold eval-mode BN into the Linears and pack for the eval kernel.

    vecs rows: 0 w1f_last, 1 b1f, 2 b2f, 3 b3f, 4 b4f, 5 b5f, 6 w6, 7 b6.
    """
    d_main, rem = _split_dims(dim)
    w1f, b1f = _fold_bn(p["w1"], p["b1"], p["g1"], p["be1"], p["rm1"], p["rv1"])
    w2f, b2f = _fold_bn(p["w2"], p["b2"], p["g2"], p["be2"], p["rm2"], p["rv2"])
    w3f, b3f = _fold_bn(p["w3"], p["b3"], p["g3"], p["be3"], p["rm3"], p["rv3"])
    w4f, b4f = _fold_bn(p["w4"], p["b4"], p["g4"], p["be4"], p["rm4"], p["rv4"])
    w5f, b5f = _fold_bn(p["w5"], p["b5"], p["g5"], p["be5"], p["rm5"], p["rv5"])
    w1_last = w1f[d_main, :] if rem else jnp.zeros((H,), F32)
    return dict(
        w1=w1f[:d_main].astype(BF16),
        w234=jnp.stack([w2f, w3f, w4f]).astype(BF16),
        w5=jnp.pad(w5f, ((0, 0), (0, M_PAD - M))).astype(BF16),
        vecs=_pack_rows([w1_last, b1f, b2f, b3f, b4f, b5f,
                         p["w6"][:, 0], p["b6"]]))


# ---------------------------------------------------------------------------
# Wrappers
# ---------------------------------------------------------------------------
@jax.jit
def respair_distance_train(x, packed):
    """Training-mode BN (batch statistics).  x: [N, dim] f32 -> [N, 1] f32.

    Whole batch in one block (batch statistics couple all rows).  With bf16
    inter-layer activations, keep N <~ 6-8k on v7x (64 MiB VMEM) and <~ 16-20k
    on v5e/v6e, or switch to the folded eval path for larger batches.

    TODO(synk): for large N, overlap the x HBM->VMEM DMA with fc1 via a
    row-chunked pltpu.emit_pipeline with cross-chunk BN-stat accumulators;
    the current grid-less call gets no pipelining.
    """
    n, dim = x.shape
    d_main = packed["w1"].shape[0]
    x_main = x[:, :d_main].astype(BF16)
    if dim > d_main:
        xlast = x[:, d_main:d_main + 1].astype(F32)
    else:
        xlast = jnp.zeros((n, 1), F32)

    vmem = pl.BlockSpec(memory_space=pltpu.MemorySpace.VMEM)
    return pl.pallas_call(
        _train_kernel,
        out_shape=jax.ShapeDtypeStruct((n, 1), F32),
        in_specs=[vmem] * 6,
        out_specs=vmem,
        compiler_params=pltpu.CompilerParams(
            vmem_limit_bytes=_vmem_limit_bytes()),
    )(x_main, xlast, packed["w1"], packed["w234"], packed["w5"], packed["vecs"])


def _pick_eval_tile(n):
    """Batch tile for the eval grid.

    Big enough to amortize the ~0.35 us per-grid-step overhead (up to 2048
    rows, <~12 MiB working set), but keeping >= 2 grid steps whenever the
    batch allows so v7x can shard the "parallel" axis over both TensorCores.
    """
    n128 = _round_up(max(n, 1), 128)
    steps = max(pl.cdiv(n128, 2048), 2 if n128 >= 256 else 1)
    return _round_up(pl.cdiv(n128, steps), 128)


@jax.jit
def respair_distance_eval(x, packed):
    """Eval-mode BN folded into the Linears; batch tiled with a parallel grid."""
    n, dim = x.shape
    d_main = packed["w1"].shape[0]
    tile_n = _pick_eval_tile(n)
    n_pad = _round_up(n, tile_n)

    x_main = jnp.pad(x[:, :d_main], ((0, n_pad - n), (0, 0))).astype(BF16)
    if dim > d_main:
        xlast = jnp.pad(x[:, d_main:d_main + 1],
                        ((0, n_pad - n), (0, 0))).astype(F32)
    else:
        xlast = jnp.zeros((n_pad, 1), F32)

    out = pl.pallas_call(
        _eval_kernel,
        out_shape=jax.ShapeDtypeStruct((n_pad, 1), F32),
        grid=(n_pad // tile_n,),
        in_specs=[
            pl.BlockSpec((tile_n, d_main), lambda i: (i, 0)),   # x: pipelined
            pl.BlockSpec((tile_n, 1), lambda i: (i, 0)),        # hop-flag col
            pl.BlockSpec((d_main, H), lambda i: (0, 0)),        # weights stay
            pl.BlockSpec((3, H, H), lambda i: (0, 0, 0)),       #   VMEM-resident
            pl.BlockSpec((H, M_PAD), lambda i: (0, 0)),         #   (constant
            pl.BlockSpec(packed["vecs"].shape, lambda i: (0, 0)),  # block idx)
        ],
        out_specs=pl.BlockSpec((tile_n, 1), lambda i: (i, 0)),
        compiler_params=pltpu.CompilerParams(
            dimension_semantics=("parallel",),
            vmem_limit_bytes=_vmem_limit_bytes()),
    )(x_main, xlast, packed["w1"], packed["w234"], packed["w5"], packed["vecs"])
    return out[:n]


# ---------------------------------------------------------------------------
# Parameters (PyTorch-style Linear init; BN gamma/beta/running stats random so
# both modes are exercised non-trivially) and pure-JAX references.
# ---------------------------------------------------------------------------
def make_params(key, dim):
    ks = list(jax.random.split(key, 32))
    it = iter(ks)

    def linear(c_in, c_out):
        k = 1.0 / jnp.sqrt(jnp.float32(c_in))
        w = jax.random.uniform(next(it), (c_in, c_out), F32, -k, k)
        b = jax.random.uniform(next(it), (c_out,), F32, -k, k)
        return w, b

    def bn(c):
        g = jax.random.uniform(next(it), (c,), F32, 0.5, 1.5)
        be = 0.1 * jax.random.normal(next(it), (c,), F32)
        rm = 0.1 * jax.random.normal(next(it), (c,), F32)
        rv = jax.random.uniform(next(it), (c,), F32, 0.5, 1.5)
        return g, be, rm, rv

    p = {}
    p["w1"], p["b1"] = linear(dim, H)
    p["g1"], p["be1"], p["rm1"], p["rv1"] = bn(H)
    for l in (2, 3, 4):
        p[f"w{l}"], p[f"b{l}"] = linear(H, H)
        p[f"g{l}"], p[f"be{l}"], p[f"rm{l}"], p[f"rv{l}"] = bn(H)
    p["w5"], p["b5"] = linear(H, M)
    p["g5"], p["be5"], p["rm5"], p["rv5"] = bn(M)
    p["w6"], p["b6"] = linear(M, 1)
    return p


def _mm(a, w, use_bf16):
    if use_bf16:
        return jnp.dot(a.astype(BF16), w.astype(BF16), preferred_element_type=F32)
    return jnp.dot(a, w, preferred_element_type=F32)


def _fc1_ref(x, w1, b1, use_bf16):
    """fc1 with the same K-split the kernel uses: main cols on the MXU,
    remainder column as an f32 broadcast multiply-add."""
    dim = x.shape[1]
    d_main = (dim // 128) * 128
    h = _mm(x[:, :d_main], w1[:d_main], use_bf16)
    if d_main < dim:
        h = h + x[:, d_main:] * w1[d_main:d_main + 1, :]
    return h + b1


def reference_train(x, p, *, use_bf16=True):
    def bn(h, g, be):
        mu = jnp.mean(h, axis=0, keepdims=True)
        var = jnp.mean(jnp.square(h - mu), axis=0, keepdims=True)
        return (h - mu) * jax.lax.rsqrt(var + EPS) * g + be

    def rnd(a):   # kernel keeps the inter-layer activation in bf16
        return a.astype(BF16).astype(F32) if use_bf16 else a

    h = jax.nn.relu(bn(_fc1_ref(x, p["w1"], p["b1"], use_bf16),
                       p["g1"], p["be1"]))
    h = rnd(h)
    for l in (2, 3, 4):
        t = bn(_mm(h, p[f"w{l}"], use_bf16) + p[f"b{l}"], p[f"g{l}"], p[f"be{l}"])
        h = rnd(jax.nn.relu(t + h))
    h = jax.nn.relu(bn(_mm(h, p["w5"], use_bf16) + p["b5"], p["g5"], p["be5"]))
    return jax.nn.relu(h @ p["w6"] + p["b6"])


def reference_eval(x, p, *, use_bf16=True, folded=True):
    if folded:
        lin = {l: _fold_bn(p[f"w{l}"], p[f"b{l}"], p[f"g{l}"], p[f"be{l}"],
                           p[f"rm{l}"], p[f"rv{l}"]) for l in (1, 2, 3, 4, 5)}
        w1f, b1f = lin[1]
        h = jax.nn.relu(_fc1_ref(x, w1f, b1f, use_bf16))
        for l in (2, 3, 4):
            w, b = lin[l]
            h = jax.nn.relu(_mm(h, w, use_bf16) + b + h)
        w5f, b5f = lin[5]
        h = jax.nn.relu(_mm(h, w5f, use_bf16) + b5f)
        return jax.nn.relu(h @ p["w6"] + p["b6"])

    def layer(h, l):
        t = jnp.dot(h, p[f"w{l}"], preferred_element_type=F32) + p[f"b{l}"]
        return ((t - p[f"rm{l}"]) * jax.lax.rsqrt(p[f"rv{l}"] + EPS)
                * p[f"g{l}"] + p[f"be{l}"])

    h = jax.nn.relu(layer(x, 1))
    for l in (2, 3, 4):
        h = jax.nn.relu(layer(h, l) + h)
    h = jax.nn.relu(layer(h, 5))
    return jax.nn.relu(h @ p["w6"] + p["b6"])


if __name__ == "__main__":
    key = jax.random.PRNGKey(0)
    kx, kp = jax.random.split(key)

    DIM = 257   # ResPair_Distance(257): concat(latent_i, latent_j, hop flag)
    params = make_params(kp, DIM)

    # Weight packing / BN folding is done once and reused across calls.
    train_packed = pack_train_params(params, DIM)
    eval_packed = pack_eval_params(params, DIM)

    # --- training-mode BN (module default right after __init__) -------------
    # TODO(synk): PyTorch train() also updates running_mean/var; forward-only.
    N_TR = 64
    x_tr = jax.random.normal(kx, (N_TR, DIM), F32)
    out_tr = jax.block_until_ready(respair_distance_train(x_tr, train_packed))
    assert out_tr.shape == (N_TR, 1)
    assert bool(jnp.all(jnp.isfinite(out_tr)))
    # Tight check vs. a reference using the same bf16 casts as the kernel.
    ref_tr = reference_train(x_tr, params, use_bf16=True)
    assert jnp.allclose(out_tr, ref_tr, atol=5e-3, rtol=5e-3), \
        float(jnp.max(jnp.abs(out_tr - ref_tr)))
    # Loose check vs. the full-f32 module semantics (bf16 MXU noise only).
    ref_tr_f32 = reference_train(x_tr, params, use_bf16=False)
    assert jnp.allclose(out_tr, ref_tr_f32, atol=0.15, rtol=0.15), \
        float(jnp.max(jnp.abs(out_tr - ref_tr_f32)))

    # --- eval-mode BN, folded into the Linears and gridded over the batch ---
    N_EV = 320   # not a multiple of the tile: exercises row padding
    x_ev = jax.random.normal(jax.random.fold_in(kx, 1), (N_EV, DIM), F32)
    out_ev = jax.block_until_ready(respair_distance_eval(x_ev, eval_packed))
    assert out_ev.shape == (N_EV, 1)
    assert bool(jnp.all(jnp.isfinite(out_ev)))
    ref_ev = reference_eval(x_ev, params, use_bf16=True, folded=True)
    assert jnp.allclose(out_ev, ref_ev, atol=5e-3, rtol=5e-3), \
        float(jnp.max(jnp.abs(out_ev - ref_ev)))
    ref_ev_f32 = reference_eval(x_ev, params, use_bf16=False, folded=False)
    assert jnp.allclose(out_ev, ref_ev_f32, atol=0.15, rtol=0.15), \
        float(jnp.max(jnp.abs(out_ev - ref_ev_f32)))

    print("KERNEL_OK")
</pallas_src>

<mosaic_0001>
module attributes {stable_mosaic.version = 11 : i64} {
  func.func @_train_kernel(%arg0: memref<64x256xbf16, #tpu.memory_space<vmem>>, %arg1: memref<64x1xf32, #tpu.memory_space<vmem>>, %arg2: memref<256x256xbf16, #tpu.memory_space<vmem>>, %arg3: memref<3x256x256xbf16, #tpu.memory_space<vmem>>, %arg4: memref<256x128xbf16, #tpu.memory_space<vmem>>, %arg5: memref<24x256xf32, #tpu.memory_space<vmem>>, %arg6: memref<64x1xf32, #tpu.memory_space<vmem>>) attributes {dimension_semantics = [], scalar_prefetch = 0 : i64, scratch_operands = 0 : i64, tpu.core_type = #tpu.core_type<tc>} {
    %c0 = arith.constant 0 : index
    %c0_0 = arith.constant 0 : index
    %0 = vector.load %arg0[%c0, %c0_0] : memref<64x256xbf16, #tpu.memory_space<vmem>>, vector<64x256xbf16>
    %c0_1 = arith.constant 0 : index
    %c0_2 = arith.constant 0 : index
    %1 = vector.load %arg2[%c0_1, %c0_2] : memref<256x256xbf16, #tpu.memory_space<vmem>>, vector<256x256xbf16>
    %cst = arith.constant dense<0.000000e+00> : vector<64x256xf32>
    %2 = tpu.matmul %0, %1, %cst {dimension_numbers = #tpu.dot_dimension_numbers<[1], [0], [0], [1], [0, 0, 1, 1], [], []>} : vector<64x256xbf16>, vector<256x256xbf16>, vector<64x256xf32> -> vector<64x256xf32>
    %c0_3 = arith.constant 0 : index
    %c0_4 = arith.constant 0 : index
    %3 = vector.load %arg1[%c0_3, %c0_4] : memref<64x1xf32, #tpu.memory_space<vmem>>, vector<64x1xf32>
    %c0_5 = arith.constant 0 : index
    %c0_6 = arith.constant 0 : index
    %4 = vector.load %arg5[%c0_5, %c0_6] : memref<24x256xf32, #tpu.memory_space<vmem>>, vector<1x256xf32>
    %5 = vector.broadcast %3 : vector<64x1xf32> to vector<64x256xf32>
    %6 = vector.broadcast %4 : vector<1x256xf32> to vector<64x256xf32>
    %7 = arith.mulf %5, %6 : vector<64x256xf32>
    %8 = arith.addf %2, %7 : vector<64x256xf32>
    %c1 = arith.constant 1 : index
    %c0_7 = arith.constant 0 : index
    %9 = vector.load %arg5[%c1, %c0_7] : memref<24x256xf32, #tpu.memory_space<vmem>>, vector<1x256xf32>
    %10 = vector.broadcast %9 : vector<1x256xf32> to vector<64x256xf32>
    %11 = arith.addf %8, %10 : vector<64x256xf32>
    %c2 = arith.constant 2 : index
    %c0_8 = arith.constant 0 : index
    %12 = vector.load %arg5[%c2, %c0_8] : memref<24x256xf32, #tpu.memory_space<vmem>>, vector<1x256xf32>
    %c3 = arith.constant 3 : index
    %c0_9 = arith.constant 0 : index
    %13 = vector.load %arg5[%c3, %c0_9] : memref<24x256xf32, #tpu.memory_space<vmem>>, vector<1x256xf32>
    %cst_10 = arith.constant dense<0.000000e+00> : vector<256xf32>
    %14 = vector.multi_reduction <add>, %11, %cst_10 [0] : vector<64x256xf32> to vector<256xf32>
    %15 = vector.shape_cast %14 : vector<256xf32> to vector<1x256xf32>
    %cst_11 = arith.constant 6.400000e+01 : f32
    %16 = vector.broadcast %cst_11 : f32 to vector<1x256xf32>
    %17 = arith.divf %15, %16 : vector<1x256xf32>
    %18 = vector.broadcast %17 : vector<1x256xf32> to vector<64x256xf32>
    %19 = arith.subf %11, %18 : vector<64x256xf32>
    %20 = arith.mulf %19, %19 : vector<64x256xf32>
    %cst_12 = arith.constant dense<0.000000e+00> : vector<256xf32>
    %21 = vector.multi_reduction <add>, %20, %cst_12 [0] : vector<64x256xf32> to vector<256xf32>
    %22 = vector.shape_cast %21 : vector<256xf32> to vector<1x256xf32>
    %cst_13 = arith.constant 6.400000e+01 : f32
    %23 = vector.broadcast %cst_13 : f32 to vector<1x256xf32>
    %24 = arith.divf %22, %23 : vector<1x256xf32>
    %cst_14 = arith.constant 9.99999974E-6 : f32
    %25 = vector.broadcast %cst_14 : f32 to vector<1x256xf32>
    %26 = arith.addf %24, %25 : vector<1x256xf32>
    %27 = math.rsqrt %26 : vector<1x256xf32>
    %28 = arith.mulf %12, %27 : vector<1x256xf32>
    %29 = arith.mulf %17, %28 : vector<1x256xf32>
    %30 = arith.subf %13, %29 : vector<1x256xf32>
    %31 = vector.broadcast %28 : vector<1x256xf32> to vector<64x256xf32>
    %32 = arith.mulf %11, %31 : vector<64x256xf32>
    %33 = vector.broadcast %30 : vector<1x256xf32> to vector<64x256xf32>
    %34 = arith.addf %32, %33 : vector<64x256xf32>
    %cst_15 = arith.constant 0.000000e+00 : f32
    %35 = vector.broadcast %cst_15 : f32 to vector<64x256xf32>
    %36 = arith.maximumf %34, %35 : vector<64x256xf32>
    %37 = arith.truncf %36 : vector<64x256xf32> to vector<64x256xbf16>
    %c0_16 = arith.constant 0 : index
    %c0_17 = arith.constant 0 : index
    %c0_18 = arith.constant 0 : index
    %38 = vector.load %arg3[%c0_16, %c0_17, %c0_18] : memref<3x256x256xbf16, #tpu.memory_space<vmem>>, vector<1x256x256xbf16>
    %39 = vector.shape_cast %38 : vector<1x256x256xbf16> to vector<256x256xbf16>
    %cst_19 = arith.constant dense<0.000000e+00> : vector<64x256xf32>
    %40 = tpu.matmul %37, %39, %cst_19 {dimension_numbers = #tpu.dot_dimension_numbers<[1], [0], [0], [1], [0, 0, 1, 1], [], []>} : vector<64x256xbf16>, vector<256x256xbf16>, vector<64x256xf32> -> vector<64x256xf32>
    %c4 = arith.constant 4 : index
    %c0_20 = arith.constant 0 : index
    %41 = vector.load %arg5[%c4, %c0_20] : memref<24x256xf32, #tpu.memory_space<vmem>>, vector<1x256xf32>
    %42 = vector.broadcast %41 : vector<1x256xf32> to vector<64x256xf32>
    %43 = arith.addf %40, %42 : vector<64x256xf32>
    %c5 = arith.constant 5 : index
    %c0_21 = arith.constant 0 : index
    %44 = vector.load %arg5[%c5, %c0_21] : memref<24x256xf32, #tpu.memory_space<vmem>>, vector<1x256xf32>
    %c6 = arith.constant 6 : index
    %c0_22 = arith.constant 0 : index
    %45 = vector.load %arg5[%c6, %c0_22] : memref<24x256xf32, #tpu.memory_space<vmem>>, vector<1x256xf32>
    %cst_23 = arith.constant dense<0.000000e+00> : vector<256xf32>
    %46 = vector.multi_reduction <add>, %43, %cst_23 [0] : vector<64x256xf32> to vector<256xf32>
    %47 = vector.shape_cast %46 : vector<256xf32> to vector<1x256xf32>
    %cst_24 = arith.constant 6.400000e+01 : f32
    %48 = vector.broadcast %cst_24 : f32 to vector<1x256xf32>
    %49 = arith.divf %47, %48 : vector<1x256xf32>
    %50 = vector.broadcast %49 : vector<1x256xf32> to vector<64x256xf32>
    %51 = arith.subf %43, %50 : vector<64x256xf32>
    %52 = arith.mulf %51, %51 : vector<64x256xf32>
    %cst_25 = arith.constant dense<0.000000e+00> : vector<256xf32>
    %53 = vector.multi_reduction <add>, %52, %cst_25 [0] : vector<64x256xf32> to vector<256xf32>
    %54 = vector.shape_cast %53 : vector<256xf32> to vector<1x256xf32>
    %cst_26 = arith.constant 6.400000e+01 : f32
    %55 = vector.broadcast %cst_26 : f32 to vector<1x256xf32>
    %56 = arith.divf %54, %55 : vector<1x256xf32>
    %cst_27 = arith.constant 9.99999974E-6 : f32
    %57 = vector.broadcast %cst_27 : f32 to vector<1x256xf32>
    %58 = arith.addf %56, %57 : vector<1x256xf32>
    %59 = math.rsqrt %58 : vector<1x256xf32>
    %60 = arith.mulf %44, %59 : vector<1x256xf32>
    %61 = arith.mulf %49, %60 : vector<1x256xf32>
    %62 = arith.subf %45, %61 : vector<1x256xf32>
    %63 = vector.broadcast %60 : vector<1x256xf32> to vector<64x256xf32>
    %64 = arith.mulf %43, %63 : vector<64x256xf32>
    %65 = vector.broadcast %62 : vector<1x256xf32> to vector<64x256xf32>
    %66 = arith.addf %64, %65 : vector<64x256xf32>
    %67 = arith.extf %37 : vector<64x256xbf16> to vector<64x256xf32>
    %68 = arith.addf %66, %67 : vector<64x256xf32>
    %cst_28 = arith.constant 0.000000e+00 : f32
    %69 = vector.broadcast %cst_28 : f32 to vector<64x256xf32>
    %70 = arith.maximumf %68, %69 : vector<64x256xf32>
    %71 = arith.truncf %70 : vector<64x256xf32> to vector<64x256xbf16>
    %c1_29 = arith.constant 1 : index
    %c0_30 = arith.constant 0 : index
    %c0_31 = arith.constant 0 : index
    %72 = vector.load %arg3[%c1_29, %c0_30, %c0_31] : memref<3x256x256xbf16, #tpu.memory_space<vmem>>, vector<1x256x256xbf16>
    %73 = vector.shape_cast %72 : vector<1x256x256xbf16> to vector<256x256xbf16>
    %cst_32 = arith.constant dense<0.000000e+00> : vector<64x256xf32>
    %74 = tpu.matmul %71, %73, %cst_32 {dimension_numbers = #tpu.dot_dimension_numbers<[1], [0], [0], [1], [0, 0, 1, 1], [], []>} : vector<64x256xbf16>, vector<256x256xbf16>, vector<64x256xf32> -> vector<64x256xf32>
    %c7 = arith.constant 7 : index
    %c0_33 = arith.constant 0 : index
    %75 = vector.load %arg5[%c7, %c0_33] : memref<24x256xf32, #tpu.memory_space<vmem>>, vector<1x256xf32>
    %76 = vector.broadcast %75 : vector<1x256xf32> to vector<64x256xf32>
    %77 = arith.addf %74, %76 : vector<64x256xf32>
    %c8 = arith.constant 8 : index
    %c0_34 = arith.constant 0 : index
    %78 = vector.load %arg5[%c8, %c0_34] : memref<24x256xf32, #tpu.memory_space<vmem>>, vector<1x256xf32>
    %c9 = arith.constant 9 : index
    %c0_35 = arith.constant 0 : index
    %79 = vector.load %arg5[%c9, %c0_35] : memref<24x256xf32, #tpu.memory_space<vmem>>, vector<1x256xf32>
    %cst_36 = arith.constant dense<0.000000e+00> : vector<256xf32>
    %80 = vector.multi_reduction <add>, %77, %cst_36 [0] : vector<64x256xf32> to vector<256xf32>
    %81 = vector.shape_cast %80 : vector<256xf32> to vector<1x256xf32>
    %cst_37 = arith.constant 6.400000e+01 : f32
    %82 = vector.broadcast %cst_37 : f32 to vector<1x256xf32>
    %83 = arith.divf %81, %82 : vector<1x256xf32>
    %84 = vector.broadcast %83 : vector<1x256xf32> to vector<64x256xf32>
    %85 = arith.subf %77, %84 : vector<64x256xf32>
    %86 = arith.mulf %85, %85 : vector<64x256xf32>
    %cst_38 = arith.constant dense<0.000000e+00> : vector<256xf32>
    %87 = vector.multi_reduction <add>, %86, %cst_38 [0] : vector<64x256xf32> to vector<256xf32>
    %88 = vector.shape_cast %87 : vector<256xf32> to vector<1x256xf32>
    %cst_39 = arith.constant 6.400000e+01 : f32
    %89 = vector.broadcast %cst_39 : f32 to vector<1x256xf32>
    %90 = arith.divf %88, %89 : vector<1x256xf32>
    %cst_40 = arith.constant 9.99999974E-6 : f32
    %91 = vector.broadcast %cst_40 : f32 to vector<1x256xf32>
    %92 = arith.addf %90, %91 : vector<1x256xf32>
    %93 = math.rsqrt %92 : vector<1x256xf32>
    %94 = arith.mulf %78, %93 : vector<1x256xf32>
    %95 = arith.mulf %83, %94 : vector<1x256xf32>
    %96 = arith.subf %79, %95 : vector<1x256xf32>
    %97 = vector.broadcast %94 : vector<1x256xf32> to vector<64x256xf32>
    %98 = arith.mulf %77, %97 : vector<64x256xf32>
    %99 = vector.broadcast %96 : vector<1x256xf32> to vector<64x256xf32>
    %100 = arith.addf %98, %99 : vector<64x256xf32>
    %101 = arith.extf %71 : vector<64x256xbf16> to vector<64x256xf32>
    %102 = arith.addf %100, %101 : vector<64x256xf32>
    %cst_41 = arith.constant 0.000000e+00 : f32
    %103 = vector.broadcast %cst_41 : f32 to vector<64x256xf32>
    %104 = arith.maximumf %102, %103 : vector<64x256xf32>
    %105 = arith.truncf %104 : vector<64x256xf32> to vector<64x256xbf16>
    %c2_42 = arith.constant 2 : index
    %c0_43 = arith.constant 0 : index
    %c0_44 = arith.constant 0 : index
    %106 = vector.load %arg3[%c2_42, %c0_43, %c0_44] : memref<3x256x256xbf16, #tpu.memory_space<vmem>>, vector<1x256x256xbf16>
    %107 = vector.shape_cast %106 : vector<1x256x256xbf16> to vector<256x256xbf16>
    %cst_45 = arith.constant dense<0.000000e+00> : vector<64x256xf32>
    %108 = tpu.matmul %105, %107, %cst_45 {dimension_numbers = #tpu.dot_dimension_numbers<[1], [0], [0], [1], [0, 0, 1, 1], [], []>} : vector<64x256xbf16>, vector<256x256xbf16>, vector<64x256xf32> -> vector<64x256xf32>
    %c10 = arith.constant 10 : index
    %c0_46 = arith.constant 0 : index
    %109 = vector.load %arg5[%c10, %c0_46] : memref<24x256xf32, #tpu.memory_space<vmem>>, vector<1x256xf32>
    %110 = vector.broadcast %109 : vector<1x256xf32> to vector<64x256xf32>
    %111 = arith.addf %108, %110 : vector<64x256xf32>
    %c11 = arith.constant 11 : index
    %c0_47 = arith.constant 0 : index
    %112 = vector.load %arg5[%c11, %c0_47] : memref<24x256xf32, #tpu.memory_space<vmem>>, vector<1x256xf32>
    %c12 = arith.constant 12 : index
    %c0_48 = arith.constant 0 : index
    %113 = vector.load %arg5[%c12, %c0_48] : memref<24x256xf32, #tpu.memory_space<vmem>>, vector<1x256xf32>
    %cst_49 = arith.constant dense<0.000000e+00> : vector<256xf32>
    %114 = vector.multi_reduction <add>, %111, %cst_49 [0] : vector<64x256xf32> to vector<256xf32>
    %115 = vector.shape_cast %114 : vector<256xf32> to vector<1x256xf32>
    %cst_50 = arith.constant 6.400000e+01 : f32
    %116 = vector.broadcast %cst_50 : f32 to vector<1x256xf32>
    %117 = arith.divf %115, %116 : vector<1x256xf32>
    %118 = vector.broadcast %117 : vector<1x256xf32> to vector<64x256xf32>
    %119 = arith.subf %111, %118 : vector<64x256xf32>
    %120 = arith.mulf %119, %119 : vector<64x256xf32>
    %cst_51 = arith.constant dense<0.000000e+00> : vector<256xf32>
    %121 = vector.multi_reduction <add>, %120, %cst_51 [0] : vector<64x256xf32> to vector<256xf32>
    %122 = vector.shape_cast %121 : vector<256xf32> to vector<1x256xf32>
    %cst_52 = arith.constant 6.400000e+01 : f32
    %123 = vector.broadcast %cst_52 : f32 to vector<1x256xf32>
    %124 = arith.divf %122, %123 : vector<1x256xf32>
    %cst_53 = arith.constant 9.99999974E-6 : f32
    %125 = vector.broadcast %cst_53 : f32 to vector<1x256xf32>
    %126 = arith.addf %124, %125 : vector<1x256xf32>
    %127 = math.rsqrt %126 : vector<1x256xf32>
    %128 = arith.mulf %112, %127 : vector<1x256xf32>
    %129 = arith.mulf %117, %128 : vector<1x256xf32>
    %130 = arith.subf %113, %129 : vector<1x256xf32>
    %131 = vector.broadcast %128 : vector<1x256xf32> to vector<64x256xf32>
    %132 = arith.mulf %111, %131 : vector<64x256xf32>
    %133 = vector.broadcast %130 : vector<1x256xf32> to vector<64x256xf32>
    %134 = arith.addf %132, %133 : vector<64x256xf32>
    %135 = arith.extf %105 : vector<64x256xbf16> to vector<64x256xf32>
    %136 = arith.addf %134, %135 : vector<64x256xf32>
    %cst_54 = arith.constant 0.000000e+00 : f32
    %137 = vector.broadcast %cst_54 : f32 to vector<64x256xf32>
    %138 = arith.maximumf %136, %137 : vector<64x256xf32>
    %139 = arith.truncf %138 : vector<64x256xf32> to vector<64x256xbf16>
    %c0_55 = arith.constant 0 : index
    %c0_56 = arith.constant 0 : index
    %140 = vector.load %arg4[%c0_55, %c0_56] : memref<256x128xbf16, #tpu.memory_space<vmem>>, vector<256x128xbf16>
    %cst_57 = arith.constant dense<0.000000e+00> : vector<64x128xf32>
    %141 = tpu.matmul %139, %140, %cst_57 {dimension_numbers = #tpu.dot_dimension_numbers<[1], [0], [0], [1], [0, 0, 1, 1], [], []>} : vector<64x256xbf16>, vector<256x128xbf16>, vector<64x128xf32> -> vector<64x128xf32>
    %c13 = arith.constant 13 : index
    %c0_58 = arith.constant 0 : index
    %142 = vector.load %arg5[%c13, %c0_58] : memref<24x256xf32, #tpu.memory_space<vmem>>, vector<1x128xf32>
    %143 = vector.broadcast %142 : vector<1x128xf32> to vector<64x128xf32>
    %144 = arith.addf %141, %143 : vector<64x128xf32>
    %c14 = arith.constant 14 : index
    %c0_59 = arith.constant 0 : index
    %145 = vector.load %arg5[%c14, %c0_59] : memref<24x256xf32, #tpu.memory_space<vmem>>, vector<1x128xf32>
    %c15 = arith.constant 15 : index
    %c0_60 = arith.constant 0 : index
    %146 = vector.load %arg5[%c15, %c0_60] : memref<24x256xf32, #tpu.memory_space<vmem>>, vector<1x128xf32>
    %cst_61 = arith.constant dense<0.000000e+00> : vector<128xf32>
    %147 = vector.multi_reduction <add>, %144, %cst_61 [0] : vector<64x128xf32> to vector<128xf32>
    %148 = vector.shape_cast %147 : vector<128xf32> to vector<1x128xf32>
    %cst_62 = arith.constant 6.400000e+01 : f32
    %149 = vector.broadcast %cst_62 : f32 to vector<1x128xf32>
    %150 = arith.divf %148, %149 : vector<1x128xf32>
    %151 = vector.broadcast %150 : vector<1x128xf32> to vector<64x128xf32>
    %152 = arith.subf %144, %151 : vector<64x128xf32>
    %153 = arith.mulf %152, %152 : vector<64x128xf32>
    %cst_63 = arith.constant dense<0.000000e+00> : vector<128xf32>
    %154 = vector.multi_reduction <add>, %153, %cst_63 [0] : vector<64x128xf32> to vector<128xf32>
    %155 = vector.shape_cast %154 : vector<128xf32> to vector<1x128xf32>
    %cst_64 = arith.constant 6.400000e+01 : f32
    %156 = vector.broadcast %cst_64 : f32 to vector<1x128xf32>
    %157 = arith.divf %155, %156 : vector<1x128xf32>
    %cst_65 = arith.constant 9.99999974E-6 : f32
    %158 = vector.broadcast %cst_65 : f32 to vector<1x128xf32>
    %159 = arith.addf %157, %158 : vector<1x128xf32>
    %160 = math.rsqrt %159 : vector<1x128xf32>
    %161 = arith.mulf %145, %160 : vector<1x128xf32>
    %162 = arith.mulf %150, %161 : vector<1x128xf32>
    %163 = arith.subf %146, %162 : vector<1x128xf32>
    %164 = vector.broadcast %161 : vector<1x128xf32> to vector<64x128xf32>
    %165 = arith.mulf %144, %164 : vector<64x128xf32>
    %166 = vector.broadcast %163 : vector<1x128xf32> to vector<64x128xf32>
    %167 = arith.addf %165, %166 : vector<64x128xf32>
    %cst_66 = arith.constant 0.000000e+00 : f32
    %168 = vector.broadcast %cst_66 : f32 to vector<64x128xf32>
    %169 = arith.maximumf %167, %168 : vector<64x128xf32>
    %c16 = arith.constant 16 : index
    %c0_67 = arith.constant 0 : index
    %170 = vector.load %arg5[%c16, %c0_67] : memref<24x256xf32, #tpu.memory_space<vmem>>, vector<1x128xf32>
    %171 = vector.broadcast %170 : vector<1x128xf32> to vector<64x128xf32>
    %172 = arith.mulf %169, %171 : vector<64x128xf32>
    %cst_68 = arith.constant dense<0.000000e+00> : vector<64xf32>
    %173 = vector.multi_reduction <add>, %172, %cst_68 [1] : vector<64x128xf32> to vector<64xf32>
    %174 = vector.shape_cast %173 : vector<64xf32> to vector<64x1xf32>
    %c17 = arith.constant 17 : index
    %c0_69 = arith.constant 0 : index
    %175 = vector.load %arg5[%c17, %c0_69] : memref<24x256xf32, #tpu.memory_space<vmem>>, vector<1x1xf32>
    %176 = vector.broadcast %175 : vector<1x1xf32> to vector<64x1xf32>
    %177 = arith.addf %174, %176 : vector<64x1xf32>
    %cst_70 = arith.constant 0.000000e+00 : f32
    %178 = vector.broadcast %cst_70 : f32 to vector<64x1xf32>
    %179 = arith.maximumf %177, %178 : vector<64x1xf32>
    %c0_71 = arith.constant 0 : index
    %c0_72 = arith.constant 0 : index
    %180 = vector.load %arg6[%c0_71, %c0_72] : memref<64x1xf32, #tpu.memory_space<vmem>>, vector<64x1xf32>
    tpu.vector_store %arg6[%c0_71, %c0_72], %179 {strides = array<i32>} : memref<64x1xf32, #tpu.memory_space<vmem>>, vector<64x1xf32>,
    return
  }
}

</mosaic_0001>

<llo_original>
// kernel: respair_distance_train.1
$region0: #{respair_distance_train.1}
  #allocation0 [shape = 'u32[]', space=smem, size = 0x4, offset = 0x4, fixed_abs, tag = 'smem constant byte address 0x4 - core index']
  #allocation1 [shape = 'u32[144,128]{1,0:T(1,128)}', space=vmem, size = 0x12000, scoped, tag = 'internal scratch']
  %s0 = inlined_call_operand.vmem [shape: bf16[64,256], index: 0, kind: input, shape index: {}]
  %s1 = inlined_call_operand.vmem [shape: f32[64,1], index: 1, kind: input, shape index: {}]
  %s2 = inlined_call_operand.hbm [shape: bf16[256,256], index: 2, kind: input, shape index: {}]
  %s3 = inlined_call_operand.hbm [shape: bf16[3,256,256], index: 3, kind: input, shape index: {}]
  %s4 = inlined_call_operand.vmem [shape: bf16[256,128], index: 4, kind: input, shape index: {}]
  %s5 = inlined_call_operand.vmem [shape: f32[24,256], index: 5, kind: input, shape index: {}]
  %s6 = inlined_call_operand.vmem [shape: f32[64,1], index: 6, kind: output, shape index: {}]
  %s7 = sld [smem:[#allocation0]]
  $region42: #{respair_distance_train.1} parent=0
    _
  %s9 = ssub.s32 1, %s7
  %s10 = scalar_select 0, %s9, %s7
  $region1: #{respair_distance_train.1} parent=0
    #allocation2 [shape = 'u8[131072]{0}', space=vmem, size = 0x20000, scoped, tag = 'input window, operand 2, single buffered']
    #allocation3 [shape = 's32[1]{0}', space=sflag, size = 0x4, scoped, tag = 'scoped memory for respair_distance_train.1']
    #allocation4 [shape = 'u8[393216]{0}', space=vmem, size = 0x60000, scoped, tag = 'input window, operand 3, single buffered']
    #allocation5 [shape = 's32[1]{0}', space=sflag, size = 0x4, scoped, tag = 'scoped memory for respair_distance_train.1']
    %11 = vsyncpa [#allocation3], 0
    %12 = vsyncpa [#allocation5], 0
    // Predicated region
    $region2: #{respair_distance_train.1} parent=1 // pred_check
      _
    $region3: #{respair_distance_train.1} parent=1 // pred_check_branch
      %14 = sbr.rel (0) target = $region5
    $region4: #{respair_distance_train.1} parent=1 // pred_region
      _
    $region5: #{respair_distance_train.1} parent=1 // pred_fallthru
      _
    // Predicated region
    $region6: #{respair_distance_train.1} parent=1 // pred_check
      _
    $region7: #{respair_distance_train.1} parent=1 // pred_check_branch
      %16 = sbr.rel (0) target = $region9
    $region8: #{respair_distance_train.1} parent=1 // pred_region
      _
    $region9: #{respair_distance_train.1} parent=1 // pred_fallthru
      _
    // Predicated region
    $region10: #{respair_distance_train.1} parent=1 // pred_check
      _
    $region11: #{respair_distance_train.1} parent=1 // pred_check_branch
      %18 = sbr.rel (0) target = $region13
    $region12: #{respair_distance_train.1} parent=1 // pred_region
      %s20 = ssub.s32 4096, 4096
      %21 = vsyncadd [#allocation3], %s20
      %s22 = sshll.u32 [#allocation2], 4
      %s23 = int_to_ptr.vmem [resolvable:$true] %s22
      %28 = dma.hbm_to_vmem [thread:$0]  %s2, 4096, %s23, [#allocation3], 128, 128, 8
    $region13: #{respair_distance_train.1} parent=1 // pred_fallthru
      _
    // Predicated region
    $region14: #{respair_distance_train.1} parent=1 // pred_check
      _
    $region15: #{respair_distance_train.1} parent=1 // pred_check_branch
      %30 = sbr.rel (0) target = $region17
    $region16: #{respair_distance_train.1} parent=1 // pred_region
      %s32 = ssub.s32 12288, 12288
      %33 = vsyncadd [#allocation5], %s32
      %s34 = sshll.u32 [#allocation4], 4
      %s35 = int_to_ptr.vmem [resolvable:$true] %s34
      %40 = dma.hbm_to_vmem [thread:$0]  %s3, 12288, %s35, [#allocation5], 128, 128, 8
    $region17: #{respair_distance_train.1} parent=1 // pred_fallthru
      _
    // Predicated region
    $region18: #{respair_distance_train.1} parent=1 // pred_check
      _
    $region19: #{respair_distance_train.1} parent=1 // pred_check_branch
      %42 = sbr.rel (0) target = $region21
    $region20: #{respair_distance_train.1} parent=1 // pred_region
      _
    $region21: #{respair_distance_train.1} parent=1 // pred_fallthru
      _
    // Predicated region
    $region22: #{respair_distance_train.1} parent=1 // pred_check
      _
    $region23: #{respair_distance_train.1} parent=1 // pred_check_branch
      %44 = sbr.rel (0) target = $region25
    $region24: #{respair_distance_train.1} parent=1 // pred_region
      _
    $region25: #{respair_distance_train.1} parent=1 // pred_fallthru
      _
    // Predicated region
    $region26: #{respair_distance_train.1} parent=1 // pred_check
      _
    $region27: #{respair_distance_train.1} parent=1 // pred_check_branch
      %46 = sbr.rel (0) target = $region29
    $region28: #{respair_distance_train.1} parent=1 // pred_region
      %47 = dma.done [#allocation3], 4096
    $region29: #{respair_distance_train.1} parent=1 // pred_fallthru
      _
    // Predicated region
    $region30: #{respair_distance_train.1} parent=1 // pred_check
      _
    $region31: #{respair_distance_train.1} parent=1 // pred_check_branch
      %49 = sbr.rel (0) target = $region33
    $region32: #{respair_distance_train.1} parent=1 // pred_region
      %50 = dma.done [#allocation5], 12288
    $region33: #{respair_distance_train.1} parent=1 // pred_fallthru
      _
    %v52 = vld [vmem:[%s0] sm:$0xff]
    %v53 = vld [vmem:[%s0 + $0x8] sm:$0xff]
    %v54 = vld [vmem:[%s0 + $0x10] sm:$0xff]
    %v55 = vld [vmem:[%s0 + $0x18] sm:$0xff]
    %v56 = vld [vmem:[%s0 + $0x20] sm:$0xff]
    %v57 = vld [vmem:[%s0 + $0x28] sm:$0xff]
    %v58 = vld [vmem:[%s0 + $0x30] sm:$0xff]
    %v59 = vld [vmem:[%s0 + $0x38] sm:$0xff]
    %v60 = vld [vmem:[#allocation2] sm:$0xff]
    %v61 = vld [vmem:[#allocation2 + $0x8] sm:$0xff]
    %v62 = vld [vmem:[#allocation2 + $0x10] sm:$0xff]
    %v63 = vld [vmem:[#allocation2 + $0x18] sm:$0xff]
    %v64 = vld [vmem:[#allocation2 + $0x20] sm:$0xff]
    %v65 = vld [vmem:[#allocation2 + $0x28] sm:$0xff]
    %v66 = vld [vmem:[#allocation2 + $0x30] sm:$0xff]
    %v67 = vld [vmem:[#allocation2 + $0x38] sm:$0xff]
    %v68 = vld [vmem:[#allocation2 + $0x40] sm:$0xff]
    %v69 = vld [vmem:[#allocation2 + $0x48] sm:$0xff]
    %v70 = vld [vmem:[#allocation2 + $0x50] sm:$0xff]
    %v71 = vld [vmem:[#allocation2 + $0x58] sm:$0xff]
    %v72 = vld [vmem:[#allocation2 + $0x60] sm:$0xff]
    %v73 = vld [vmem:[#allocation2 + $0x68] sm:$0xff]
    %v74 = vld [vmem:[#allocation2 + $0x70] sm:$0xff]
    %v75 = vld [vmem:[#allocation2 + $0x78] sm:$0xff]
    %v76 = vld [vmem:[#allocation2 + $0x80] sm:$0xff]
    %v77 = vld [vmem:[#allocation2 + $0x88] sm:$0xff]
    %v78 = vld [vmem:[#allocation2 + $0x90] sm:$0xff]
    %v79 = vld [vmem:[#allocation2 + $0x98] sm:$0xff]
    %v80 = vld [vmem:[#allocation2 + $0xa0] sm:$0xff]
    %v81 = vld [vmem:[#allocation2 + $0xa8] sm:$0xff]
    %v82 = vld [vmem:[#allocation2 + $0xb0] sm:$0xff]
    %v83 = vld [vmem:[#allocation2 + $0xb8] sm:$0xff]
    %v84 = vld [vmem:[#allocation2 + $0xc0] sm:$0xff]
    %v85 = vld [vmem:[#allocation2 + $0xc8] sm:$0xff]
    %v86 = vld [vmem:[#allocation2 + $0xd0] sm:$0xff]
    %v87 = vld [vmem:[#allocation2 + $0xd8] sm:$0xff]
    %v88 = vld [vmem:[#allocation2 + $0xe0] sm:$0xff]
    %v89 = vld [vmem:[#allocation2 + $0xe8] sm:$0xff]
    %v90 = vld [vmem:[#allocation2 + $0xf0] sm:$0xff]
    %v91 = vld [vmem:[#allocation2 + $0xf8] sm:$0xff]
    %v92 = vld [vmem:[%s1] sm:$0xff]
    %v93 = vld [vmem:[%s1 + $0x8] sm:$0xff]
    %v94 = vld [vmem:[%s1 + $0x10] sm:$0xff]
    %v95 = vld [vmem:[%s1 + $0x18] sm:$0xff]
    %v96 = vld [vmem:[%s1 + $0x20] sm:$0xff]
    %v97 = vld [vmem:[%s1 + $0x28] sm:$0xff]
    %v98 = vld [vmem:[%s1 + $0x30] sm:$0xff]
    %v99 = vld [vmem:[%s1 + $0x38] sm:$0xff]
    %v100 = vld [vmem:[%s5] ss:$8 sm:$0x3]
    %102 = vset.pattern.permute.xlu0 0
    %103 = vperm.xlu0 %102, %v92
    %v104 = vpop.permute.xlu0 %103
    %107 = vset.pattern.permute.xlu0 0
    %108 = vperm.xlu0 %107, %v93
    %v109 = vpop.permute.xlu0 %108
    %112 = vset.pattern.permute.xlu0 0
    %113 = vperm.xlu0 %112, %v94
    %v114 = vpop.permute.xlu0 %113
    %117 = vset.pattern.permute.xlu0 0
    %118 = vperm.xlu0 %117, %v95
    %v119 = vpop.permute.xlu0 %118
    %122 = vset.pattern.permute.xlu0 0
    %123 = vperm.xlu0 %122, %v96
    %v124 = vpop.permute.xlu0 %123
    %127 = vset.pattern.permute.xlu0 0
    %128 = vperm.xlu0 %127, %v97
    %v129 = vpop.permute.xlu0 %128
    %132 = vset.pattern.permute.xlu0 0
    %133 = vperm.xlu0 %132, %v98
    %v134 = vpop.permute.xlu0 %133
    %137 = vset.pattern.permute.xlu0 0
    %138 = vperm.xlu0 %137, %v99
    %v139 = vpop.permute.xlu0 %138
    %v142 = vlaneseq
    %v143 = vshrl.u32 %v142, 7
    %v144 = vsub.s32 0, %v143
    %v145 = vrot.slane %v100, %v144
    %v146 = vlaneseq
    %v147 = vshrl.u32 %v146, 7
    %v148 = vsub.s32 1, %v147
    %v149 = vrot.slane %v100, %v148
    %v152 = vmul.f32 %v104, %v145
    %v153 = vmul.f32 %v104, %v149
    %v154 = vmul.f32 %v109, %v145
    %v155 = vmul.f32 %v109, %v149
    %v156 = vmul.f32 %v114, %v145
    %v157 = vmul.f32 %v114, %v149
    %v158 = vmul.f32 %v119, %v145
    %v159 = vmul.f32 %v119, %v149
    %v160 = vmul.f32 %v124, %v145
    %v161 = vmul.f32 %v124, %v149
    %v162 = vmul.f32 %v129, %v145
    %v163 = vmul.f32 %v129, %v149
    %v164 = vmul.f32 %v134, %v145
    %v165 = vmul.f32 %v134, %v149
    %v166 = vmul.f32 %v139, %v145
    %v167 = vmul.f32 %v139, %v149
    %v176 = vunpack.c.l.b16 %v52
    %v177 = vunpack.c.h.b16 %v52
    %v178 = vunpack.c.l.b16 %v53
    %v179 = vunpack.c.h.b16 %v53
    %v180 = vunpack.c.l.b16 %v54
    %v181 = vunpack.c.h.b16 %v54
    %v182 = vunpack.c.l.b16 %v55
    %v183 = vunpack.c.h.b16 %v55
    %v184 = vunpack.c.l.b16 %v56
    %v185 = vunpack.c.h.b16 %v56
    %v186 = vunpack.c.l.b16 %v57
    %v187 = vunpack.c.h.b16 %v57
    %v188 = vunpack.c.l.b16 %v58
    %v189 = vunpack.c.h.b16 %v58
    %v190 = vunpack.c.l.b16 %v59
    %v191 = vunpack.c.h.b16 %v59
    %v192 = vpack.c.b16 %v178, %v176
    %v193 = vpack.c.b16 %v179, %v177
    %v194 = vpack.c.b16 %v182, %v180
    %v195 = vpack.c.b16 %v183, %v181
    %v196 = vpack.c.b16 %v186, %v184
    %v197 = vpack.c.b16 %v187, %v185
    %v198 = vpack.c.b16 %v190, %v188
    %v199 = vpack.c.b16 %v191, %v189
    %v240 = vunpack.c.l.b16 %v60
    %v241 = vunpack.c.h.b16 %v60
    %v242 = vunpack.c.l.b16 %v61
    %v243 = vunpack.c.h.b16 %v61
    %v244 = vunpack.c.l.b16 %v62
    %v245 = vunpack.c.h.b16 %v62
    %v246 = vunpack.c.l.b16 %v63
    %v247 = vunpack.c.h.b16 %v63
    %v248 = vunpack.c.l.b16 %v64
    %v249 = vunpack.c.h.b16 %v64
    %v250 = vunpack.c.l.b16 %v65
    %v251 = vunpack.c.h.b16 %v65
    %v252 = vunpack.c.l.b16 %v66
    %v253 = vunpack.c.h.b16 %v66
    %v254 = vunpack.c.l.b16 %v67
    %v255 = vunpack.c.h.b16 %v67
    %v256 = vunpack.c.l.b16 %v68
    %v257 = vunpack.c.h.b16 %v68
    %v258 = vunpack.c.l.b16 %v69
    %v259 = vunpack.c.h.b16 %v69
    %v260 = vunpack.c.l.b16 %v70
    %v261 = vunpack.c.h.b16 %v70
    %v262 = vunpack.c.l.b16 %v71
    %v263 = vunpack.c.h.b16 %v71
    %v264 = vunpack.c.l.b16 %v72
    %v265 = vunpack.c.h.b16 %v72
    %v266 = vunpack.c.l.b16 %v73
    %v267 = vunpack.c.h.b16 %v73
    %v268 = vunpack.c.l.b16 %v74
    %v269 = vunpack.c.h.b16 %v74
    %v270 = vunpack.c.l.b16 %v75
    %v271 = vunpack.c.h.b16 %v75
    %v272 = vunpack.c.l.b16 %v76
    %v273 = vunpack.c.h.b16 %v76
    %v274 = vunpack.c.l.b16 %v77
    %v275 = vunpack.c.h.b16 %v77
    %v276 = vunpack.c.l.b16 %v78
    %v277 = vunpack.c.h.b16 %v78
    %v278 = vunpack.c.l.b16 %v79
    %v279 = vunpack.c.h.b16 %v79
    %v280 = vunpack.c.l.b16 %v80
    %v281 = vunpack.c.h.b16 %v80
    %v282 = vunpack.c.l.b16 %v81
    %v283 = vunpack.c.h.b16 %v81
    %v284 = vunpack.c.l.b16 %v82
    %v285 = vunpack.c.h.b16 %v82
    %v286 = vunpack.c.l.b16 %v83
    %v287 = vunpack.c.h.b16 %v83
    %v288 = vunpack.c.l.b16 %v84
    %v289 = vunpack.c.h.b16 %v84
    %v290 = vunpack.c.l.b16 %v85
    %v291 = vunpack.c.h.b16 %v85
    %v292 = vunpack.c.l.b16 %v86
    %v293 = vunpack.c.h.b16 %v86
    %v294 = vunpack.c.l.b16 %v87
    %v295 = vunpack.c.h.b16 %v87
    %v296 = vunpack.c.l.b16 %v88
    %v297 = vunpack.c.h.b16 %v88
    %v298 = vunpack.c.l.b16 %v89
    %v299 = vunpack.c.h.b16 %v89
    %v300 = vunpack.c.l.b16 %v90
    %v301 = vunpack.c.h.b16 %v90
    %v302 = vunpack.c.l.b16 %v91
    %v303 = vunpack.c.h.b16 %v91
    %v304 = vpack.c.b16 %v242, %v240
    %v305 = vpack.c.b16 %v243, %v241
    %v306 = vpack.c.b16 %v246, %v244
    %v307 = vpack.c.b16 %v247, %v245
    %v308 = vpack.c.b16 %v250, %v248
    %v309 = vpack.c.b16 %v251, %v249
    %v310 = vpack.c.b16 %v254, %v252
    %v311 = vpack.c.b16 %v255, %v253
    %v312 = vpack.c.b16 %v258, %v256
    %v313 = vpack.c.b16 %v259, %v257
    %v314 = vpack.c.b16 %v262, %v260
    %v315 = vpack.c.b16 %v263, %v261
    %v316 = vpack.c.b16 %v266, %v264
    %v317 = vpack.c.b16 %v267, %v265
    %v318 = vpack.c.b16 %v270, %v268
    %v319 = vpack.c.b16 %v271, %v269
    %v320 = vpack.c.b16 %v274, %v272
    %v321 = vpack.c.b16 %v275, %v273
    %v322 = vpack.c.b16 %v278, %v276
    %v323 = vpack.c.b16 %v279, %v277
    %v324 = vpack.c.b16 %v282, %v280
    %v325 = vpack.c.b16 %v283, %v281
    %v326 = vpack.c.b16 %v286, %v284
    %v327 = vpack.c.b16 %v287, %v285
    %v328 = vpack.c.b16 %v290, %v288
    %v329 = vpack.c.b16 %v291, %v289
    %v330 = vpack.c.b16 %v294, %v292
    %v331 = vpack.c.b16 %v295, %v293
    %v332 = vpack.c.b16 %v298, %v296
    %v333 = vpack.c.b16 %v299, %v297
    %v334 = vpack.c.b16 %v302, %v300
    %v335 = vpack.c.b16 %v303, %v301
    %368 = vmatprep.subr.bf16.mxu0 %v305
    %369 = vmatpush1.bf16.msra.mxu0 %v304
    %370 = vmatprep.subr.bf16.mxu0 %v307
    %371 = vmatpush1.bf16.msra.mxu0 %v306
    %372 = vmatprep.subr.bf16.mxu0 %v309
    %373 = vmatpush1.bf16.msra.mxu0 %v308
    %374 = vmatprep.subr.bf16.mxu0 %v311
    %375 = vmatpush1.bf16.msra.mxu0 %v310
    %376 = vmatprep.subr.bf16.mxu0 %v313
    %377 = vmatpush1.bf16.msra.mxu0 %v312
    %378 = vmatprep.subr.bf16.mxu0 %v315
    %379 = vmatpush1.bf16.msra.mxu0 %v314
    %380 = vmatprep.subr.bf16.mxu0 %v317
    %381 = vmatpush1.bf16.msra.mxu0 %v316
    %382 = vmatprep.subr.bf16.mxu0 %v319
    %383 = vmatpush1.bf16.msra.mxu0 %v318
    %384 = vmatprep.subr.bf16.mxu0 %v321
    %385 = vmatpush1.bf16.msra.mxu0 %v320
    %386 = vmatprep.subr.bf16.mxu0 %v323
    %387 = vmatpush1.bf16.msra.mxu0 %v322
    %388 = vmatprep.subr.bf16.mxu0 %v325
    %389 = vmatpush1.bf16.msra.mxu0 %v324
    %390 = vmatprep.subr.bf16.mxu0 %v327
    %391 = vmatpush1.bf16.msra.mxu0 %v326
    %392 = vmatprep.subr.bf16.mxu0 %v329
    %393 = vmatpush1.bf16.msra.mxu0 %v328
    %394 = vmatprep.subr.bf16.mxu0 %v331
    %395 = vmatpush1.bf16.msra.mxu0 %v330
    %396 = vmatprep.subr.bf16.mxu0 %v333
    %397 = vmatpush1.bf16.msra.mxu0 %v332
    %398 = vmatprep.subr.bf16.mxu0 %v335
    %399 = vmatpush1.bf16.msra.mxu0 %v334
    %400 = vmatprep.mubr.bf16.mxu0 %v193
    %401 = vmatmul.mubr.bf16.gmra.mrb[0].mxu0 %v192
    %v402 = vpop.f32.mrb[0].mxu0
    %v403 = vadd.f32 %v152, %v402
    %v404 = vpop.f32.mrb[0].mxu0
    %v405 = vadd.f32 %v153, %v404
    %v406 = vpop.f32.mrb[0].mxu0
    %v407 = vadd.f32 %v154, %v406
    %v408 = vpop.f32.mrb[0].mxu0
    %v409 = vadd.f32 %v155, %v408
    %410 = vmatprep.mubr.bf16.mxu0 %v195
    %411 = vmatmul.mubr.bf16.gmra.mrb[0].mxu0 %v194
    %v412 = vpop.f32.mrb[0].mxu0
    %v413 = vadd.f32 %v156, %v412
    %v414 = vpop.f32.mrb[0].mxu0
    %v415 = vadd.f32 %v157, %v414
    %v416 = vpop.f32.mrb[0].mxu0
    %v417 = vadd.f32 %v158, %v416
    %v418 = vpop.f32.mrb[0].mxu0
    %v419 = vadd.f32 %v159, %v418
    %420 = vmatprep.mubr.bf16.mxu0 %v197
    %421 = vmatmul.mubr.bf16.gmra.mrb[0].mxu0 %v196
    %v422 = vpop.f32.mrb[0].mxu0
    %v423 = vadd.f32 %v160, %v422
    %v424 = vpop.f32.mrb[0].mxu0
    %v425 = vadd.f32 %v161, %v424
    %v426 = vpop.f32.mrb[0].mxu0
    %v427 = vadd.f32 %v162, %v426
    %v428 = vpop.f32.mrb[0].mxu0
    %v429 = vadd.f32 %v163, %v428
    %430 = vmatprep.mubr.bf16.mxu0 %v199
    %431 = vmatmul.mubr.bf16.gmra.mrb[0].mxu0 %v198
    %v432 = vpop.f32.mrb[0].mxu0
    %v433 = vadd.f32 %v164, %v432
    %v434 = vpop.f32.mrb[0].mxu0
    %v435 = vadd.f32 %v165, %v434
    %v436 = vpop.f32.mrb[0].mxu0
    %v437 = vadd.f32 %v166, %v436
    %v438 = vpop.f32.mrb[0].mxu0
    %v439 = vadd.f32 %v167, %v438
    %440 = vdwg.mxu0
    %s441 = scalar_lea.vmem %s5, 1
    %v442 = vld [vmem:[%s441] ss:$8 sm:$0x3]
    %v444 = vlaneseq
    %v445 = vshrl.u32 %v444, 7
    %v446 = vsub.s32 0, %v445
    %v447 = vrot.slane %v442, %v446
    %v448 = vlaneseq
    %v449 = vshrl.u32 %v448, 7
    %v450 = vsub.s32 1, %v449
    %v451 = vrot.slane %v442, %v450
    %v454 = vadd.f32 %v403, %v447
    %v455 = vadd.f32 %v405, %v451
    %v456 = vadd.f32 %v407, %v447
    %v457 = vadd.f32 %v409, %v451
    %v458 = vadd.f32 %v413, %v447
    %v459 = vadd.f32 %v415, %v451
    %v460 = vadd.f32 %v417, %v447
    %v461 = vadd.f32 %v419, %v451
    %v462 = vadd.f32 %v423, %v447
    %v463 = vadd.f32 %v425, %v451
    %v464 = vadd.f32 %v427, %v447
    %v465 = vadd.f32 %v429, %v451
    %v466 = vadd.f32 %v433, %v447
    %v467 = vadd.f32 %v435, %v451
    %v468 = vadd.f32 %v437, %v447
    %v469 = vadd.f32 %v439, %v451
    %s470 = scalar_lea.vmem %s5, 2
    %v471 = vld [vmem:[%s470] ss:$8 sm:$0x3]
    %s472 = scalar_lea.vmem %s5, 3
    %v473 = vld [vmem:[%s472] ss:$8 sm:$0x3]
    %v474 = vadd.f32 %v454, %v456
    %v475 = vadd.f32 %v474, %v458
    %v476 = vadd.f32 %v475, %v460
    %v477 = vadd.f32 %v476, %v462
    %v478 = vadd.f32 %v477, %v464
    %v479 = vadd.f32 %v478, %v466
    %v480 = vadd.f32 %v479, %v468
    %v481 = vrot.slane %v480, 4
    %v482 = vadd.f32 %v480, %v481
    %v483 = vrot.slane %v482, 2
    %v484 = vadd.f32 %v482, %v483
    %v485 = vrot.slane %v484, 1
    %v486 = vadd.f32 %v484, %v485
    %v487 = vadd.f32 %v455, %v457
    %v488 = vadd.f32 %v487, %v459
    %v489 = vadd.f32 %v488, %v461
    %v490 = vadd.f32 %v489, %v463
    %v491 = vadd.f32 %v490, %v465
    %v492 = vadd.f32 %v491, %v467
    %v493 = vadd.f32 %v492, %v469
    %v494 = vrot.slane %v493, 4
    %v495 = vadd.f32 %v493, %v494
    %v496 = vrot.slane %v495, 2
    %v497 = vadd.f32 %v495, %v496
    %v498 = vrot.slane %v497, 1
    %v499 = vadd.f32 %v497, %v498
    %v500 = vrcp.pop 64.0
    %v501 = vmul.f32 %v486, %v500
    %v502 = vmul.f32 %v499, %v500
    %v503 = vsub.f32 %v454, %v501
    %v504 = vsub.f32 %v455, %v502
    %v505 = vsub.f32 %v456, %v501
    %v506 = vsub.f32 %v457, %v502
    %v507 = vsub.f32 %v458, %v501
    %v508 = vsub.f32 %v459, %v502
    %v509 = vsub.f32 %v460, %v501
    %v510 = vsub.f32 %v461, %v502
    %v511 = vsub.f32 %v462, %v501
    %v512 = vsub.f32 %v463, %v502
    %v513 = vsub.f32 %v464, %v501
    %v514 = vsub.f32 %v465, %v502
    %v515 = vsub.f32 %v466, %v501
    %v516 = vsub.f32 %v467, %v502
    %v517 = vsub.f32 %v468, %v501
    %v518 = vsub.f32 %v469, %v502
    %v519 = vmul.f32 %v503, %v503
    %v520 = vmul.f32 %v504, %v504
    %v521 = vmul.f32 %v505, %v505
    %v522 = vmul.f32 %v506, %v506
    %v523 = vmul.f32 %v507, %v507
    %v524 = vmul.f32 %v508, %v508
    %v525 = vmul.f32 %v509, %v509
    %v526 = vmul.f32 %v510, %v510
    %v527 = vmul.f32 %v511, %v511
    %v528 = vmul.f32 %v512, %v512
    %v529 = vmul.f32 %v513, %v513
    %v530 = vmul.f32 %v514, %v514
    %v531 = vmul.f32 %v515, %v515
    %v532 = vmul.f32 %v516, %v516
    %v533 = vmul.f32 %v517, %v517
    %v534 = vmul.f32 %v518, %v518
    %v535 = vadd.f32 %v519, %v521
    %v536 = vadd.f32 %v535, %v523
    %v537 = vadd.f32 %v536, %v525
    %v538 = vadd.f32 %v537, %v527
    %v539 = vadd.f32 %v538, %v529
    %v540 = vadd.f32 %v539, %v531
    %v541 = vadd.f32 %v540, %v533
    %v542 = vrot.slane %v541, 4
    %v543 = vadd.f32 %v541, %v542
    %v544 = vrot.slane %v543, 2
    %v545 = vadd.f32 %v543, %v544
    %v546 = vrot.slane %v545, 1
    %v547 = vadd.f32 %v545, %v546
    %v548 = vadd.f32 %v520, %v522
    %v549 = vadd.f32 %v548, %v524
    %v550 = vadd.f32 %v549, %v526
    %v551 = vadd.f32 %v550, %v528
    %v552 = vadd.f32 %v551, %v530
    %v553 = vadd.f32 %v552, %v532
    %v554 = vadd.f32 %v553, %v534
    %v555 = vrot.slane %v554, 4
    %v556 = vadd.f32 %v554, %v555
    %v557 = vrot.slane %v556, 2
    %v558 = vadd.f32 %v556, %v557
    %v559 = vrot.slane %v558, 1
    %v560 = vadd.f32 %v558, %v559
    %v561 = vmul.f32 %v547, %v500
    %v562 = vmul.f32 %v560, %v500
    %v563 = vadd.f32 %v561, 1e-05
    %v564 = vadd.f32 %v562, 1e-05
    %v565 = vrsqrt.pop %v563
    %v566 = vrsqrt.pop %v564
    %v569 = vcombine.low %v565, %v566
    %v571 = vunpack.c.l.s4 1966171168
    %v572 = vunpack.c.0.s8 %v571
    %v573 = vlaneseq
    %v574 = vshrl.u32 %v573, 7
    %v575 = vsub.s32 %v572, %v574
    %v576 = vrot.slane %v569, %v575
    %v578 = vunpack.c.l.s4 1966171168
    %v579 = vunpack.c.0.s8 %v578
    %v580 = vlaneseq
    %v581 = vshrl.u32 %v580, 7
    %v582 = vsub.s32 %v579, %v581
    %v583 = vrot.slane %v576, %v582
    %v585 = vmul.f32 %v471, %v583
    %v587 = vlaneseq
    %v588 = vshrl.u32 %v587, 7
    %v589 = vsub.s32 0, %v588
    %v590 = vrot.slane %v585, %v589
    %v591 = vlaneseq
    %v592 = vshrl.u32 %v591, 7
    %v593 = vsub.s32 1, %v592
    %v594 = vrot.slane %v585, %v593
    %v597 = vmul.f32 %v501, %v590
    %v598 = vmul.f32 %v502, %v594
    %v601 = vcombine.low %v597, %v598
    %v603 = vunpack.c.l.s4 1966171168
    %v604 = vunpack.c.0.s8 %v603
    %v605 = vlaneseq
    %v606 = vshrl.u32 %v605, 7
    %v607 = vsub.s32 %v604, %v606
    %v608 = vrot.slane %v601, %v607
    %v610 = vunpack.c.l.s4 1966171168
    %v611 = vunpack.c.0.s8 %v610
    %v612 = vlaneseq
    %v613 = vshrl.u32 %v612, 7
    %v614 = vsub.s32 %v611, %v613
    %v615 = vrot.slane %v608, %v614
    %v617 = vsub.f32 %v473, %v615
    %v618 = vmul.f32 %v454, %v590
    %v619 = vmul.f32 %v455, %v594
    %v620 = vmul.f32 %v456, %v590
    %v621 = vmul.f32 %v457, %v594
    %v622 = vmul.f32 %v458, %v590
    %v623 = vmul.f32 %v459, %v594
    %v624 = vmul.f32 %v460, %v590
    %v625 = vmul.f32 %v461, %v594
    %v626 = vmul.f32 %v462, %v590
    %v627 = vmul.f32 %v463, %v594
    %v628 = vmul.f32 %v464, %v590
    %v629 = vmul.f32 %v465, %v594
    %v630 = vmul.f32 %v466, %v590
    %v631 = vmul.f32 %v467, %v594
    %v632 = vmul.f32 %v468, %v590
    %v633 = vmul.f32 %v469, %v594
    %v635 = vlaneseq
    %v636 = vshrl.u32 %v635, 7
    %v637 = vsub.s32 0, %v636
    %v638 = vrot.slane %v617, %v637
    %v639 = vlaneseq
    %v640 = vshrl.u32 %v639, 7
    %v641 = vsub.s32 1, %v640
    %v642 = vrot.slane %v617, %v641
    %v645 = vadd.f32 %v618, %v638
    %v646 = vadd.f32 %v619, %v642
    %v647 = vadd.f32 %v620, %v638
    %v648 = vadd.f32 %v621, %v642
    %v649 = vadd.f32 %v622, %v638
    %v650 = vadd.f32 %v623, %v642
    %v651 = vadd.f32 %v624, %v638
    %v652 = vadd.f32 %v625, %v642
    %v653 = vadd.f32 %v626, %v638
    %v654 = vadd.f32 %v627, %v642
    %v655 = vadd.f32 %v628, %v638
    %v656 = vadd.f32 %v629, %v642
    %v657 = vadd.f32 %v630, %v638
    %v658 = vadd.f32 %v631, %v642
    %v659 = vadd.f32 %v632, %v638
    %v660 = vadd.f32 %v633, %v642
    %v661 = vmax.f32 %v645, 0.0
    %v662 = vmax.f32 %v646, 0.0
    %v663 = vmax.f32 %v647, 0.0
    %v664 = vmax.f32 %v648, 0.0
    %v665 = vmax.f32 %v649, 0.0
    %v666 = vmax.f32 %v650, 0.0
    %v667 = vmax.f32 %v651, 0.0
    %v668 = vmax.f32 %v652, 0.0
    %v669 = vmax.f32 %v653, 0.0
    %v670 = vmax.f32 %v654, 0.0
    %v671 = vmax.f32 %v655, 0.0
    %v672 = vmax.f32 %v656, 0.0
    %v673 = vmax.f32 %v657, 0.0
    %v674 = vmax.f32 %v658, 0.0
    %v675 = vmax.f32 %v659, 0.0
    %v676 = vmax.f32 %v660, 0.0
    %v677 = vpack.c.bf16 %v663, %v661
    %v678 = vpack.c.bf16 %v664, %v662
    %v679 = vpack.c.bf16 %v667, %v665
    %v680 = vpack.c.bf16 %v668, %v666
    %v681 = vpack.c.bf16 %v671, %v669
    %v682 = vpack.c.bf16 %v672, %v670
    %v683 = vpack.c.bf16 %v675, %v673
    %v684 = vpack.c.bf16 %v676, %v674
    %v685 = vld [vmem:[#allocation4] sm:$0xff]
    %v686 = vld [vmem:[#allocation4 + $0x8] sm:$0xff]
    %v687 = vld [vmem:[#allocation4 + $0x10] sm:$0xff]
    %v688 = vld [vmem:[#allocation4 + $0x18] sm:$0xff]
    %v689 = vld [vmem:[#allocation4 + $0x20] sm:$0xff]
    %v690 = vld [vmem:[#allocation4 + $0x28] sm:$0xff]
    %v691 = vld [vmem:[#allocation4 + $0x30] sm:$0xff]
    %v692 = vld [vmem:[#allocation4 + $0x38] sm:$0xff]
    %v693 = vld [vmem:[#allocation4 + $0x40] sm:$0xff]
    %v694 = vld [vmem:[#allocation4 + $0x48] sm:$0xff]
    %v695 = vld [vmem:[#allocation4 + $0x50] sm:$0xff]
    %v696 = vld [vmem:[#allocation4 + $0x58] sm:$0xff]
    %v697 = vld [vmem:[#allocation4 + $0x60] sm:$0xff]
    %v698 = vld [vmem:[#allocation4 + $0x68] sm:$0xff]
    %v699 = vld [vmem:[#allocation4 + $0x70] sm:$0xff]
    %v700 = vld [vmem:[#allocation4 + $0x78] sm:$0xff]
    %v701 = vld [vmem:[#allocation4 + $0x80] sm:$0xff]
    %v702 = vld [vmem:[#allocation4 + $0x88] sm:$0xff]
    %v703 = vld [vmem:[#allocation4 + $0x90] sm:$0xff]
    %v704 = vld [vmem:[#allocation4 + $0x98] sm:$0xff]
    %v705 = vld [vmem:[#allocation4 + $0xa0] sm:$0xff]
    %v706 = vld [vmem:[#allocation4 + $0xa8] sm:$0xff]
    %v707 = vld [vmem:[#allocation4 + $0xb0] sm:$0xff]
    %v708 = vld [vmem:[#allocation4 + $0xb8] sm:$0xff]
    %v709 = vld [vmem:[#allocation4 + $0xc0] sm:$0xff]
    %v710 = vld [vmem:[#allocation4 + $0xc8] sm:$0xff]
    %v711 = vld [vmem:[#allocation4 + $0xd0] sm:$0xff]
    %v712 = vld [vmem:[#allocation4 + $0xd8] sm:$0xff]
    %v713 = vld [vmem:[#allocation4 + $0xe0] sm:$0xff]
    %v714 = vld [vmem:[#allocation4 + $0xe8] sm:$0xff]
    %v715 = vld [vmem:[#allocation4 + $0xf0] sm:$0xff]
    %v716 = vld [vmem:[#allocation4 + $0xf8] sm:$0xff]
    %s717 = scalar_lea.vmem %s5, 4
    %v718 = vld [vmem:[%s717] ss:$8 sm:$0x3]
    %v720 = vlaneseq
    %v721 = vshrl.u32 %v720, 7
    %v722 = vsub.s32 0, %v721
    %v723 = vrot.slane %v718, %v722
    %v724 = vlaneseq
    %v725 = vshrl.u32 %v724, 7
    %v726 = vsub.s32 1, %v725
    %v727 = vrot.slane %v718, %v726
    %v762 = vunpack.c.l.b16 %v685
    %v763 = vunpack.c.h.b16 %v685
    %v764 = vunpack.c.l.b16 %v686
    %v765 = vunpack.c.h.b16 %v686
    %v766 = vunpack.c.l.b16 %v687
    %v767 = vunpack.c.h.b16 %v687
    %v768 = vunpack.c.l.b16 %v688
    %v769 = vunpack.c.h.b16 %v688
    %v770 = vunpack.c.l.b16 %v689
    %v771 = vunpack.c.h.b16 %v689
    %v772 = vunpack.c.l.b16 %v690
    %v773 = vunpack.c.h.b16 %v690
    %v774 = vunpack.c.l.b16 %v691
    %v775 = vunpack.c.h.b16 %v691
    %v776 = vunpack.c.l.b16 %v692
    %v777 = vunpack.c.h.b16 %v692
    %v778 = vunpack.c.l.b16 %v693
    %v779 = vunpack.c.h.b16 %v693
    %v780 = vunpack.c.l.b16 %v694
    %v781 = vunpack.c.h.b16 %v694
    %v782 = vunpack.c.l.b16 %v695
    %v783 = vunpack.c.h.b16 %v695
    %v784 = vunpack.c.l.b16 %v696
    %v785 = vunpack.c.h.b16 %v696
    %v786 = vunpack.c.l.b16 %v697
    %v787 = vunpack.c.h.b16 %v697
    %v788 = vunpack.c.l.b16 %v698
    %v789 = vunpack.c.h.b16 %v698
    %v790 = vunpack.c.l.b16 %v699
    %v791 = vunpack.c.h.b16 %v699
    %v792 = vunpack.c.l.b16 %v700
    %v793 = vunpack.c.h.b16 %v700
    %v794 = vunpack.c.l.b16 %v701
    %v795 = vunpack.c.h.b16 %v701
    %v796 = vunpack.c.l.b16 %v702
    %v797 = vunpack.c.h.b16 %v702
    %v798 = vunpack.c.l.b16 %v703
    %v799 = vunpack.c.h.b16 %v703
    %v800 = vunpack.c.l.b16 %v704
    %v801 = vunpack.c.h.b16 %v704
    %v802 = vunpack.c.l.b16 %v705
    %v803 = vunpack.c.h.b16 %v705
    %v804 = vunpack.c.l.b16 %v706
    %v805 = vunpack.c.h.b16 %v706
    %v806 = vunpack.c.l.b16 %v707
    %v807 = vunpack.c.h.b16 %v707
    %v808 = vunpack.c.l.b16 %v708
    %v809 = vunpack.c.h.b16 %v708
    %v810 = vunpack.c.l.b16 %v709
    %v811 = vunpack.c.h.b16 %v709
    %v812 = vunpack.c.l.b16 %v710
    %v813 = vunpack.c.h.b16 %v710
    %v814 = vunpack.c.l.b16 %v711
    %v815 = vunpack.c.h.b16 %v711
    %v816 = vunpack.c.l.b16 %v712
    %v817 = vunpack.c.h.b16 %v712
    %v818 = vunpack.c.l.b16 %v713
    %v819 = vunpack.c.h.b16 %v713
    %v820 = vunpack.c.l.b16 %v714
    %v821 = vunpack.c.h.b16 %v714
    %v822 = vunpack.c.l.b16 %v715
    %v823 = vunpack.c.h.b16 %v715
    %v824 = vunpack.c.l.b16 %v716
    %v825 = vunpack.c.h.b16 %v716
    %v826 = vpack.c.b16 %v764, %v762
    %v827 = vpack.c.b16 %v765, %v763
    %v828 = vpack.c.b16 %v768, %v766
    %v829 = vpack.c.b16 %v769, %v767
    %v830 = vpack.c.b16 %v772, %v770
    %v831 = vpack.c.b16 %v773, %v771
    %v832 = vpack.c.b16 %v776, %v774
    %v833 = vpack.c.b16 %v777, %v775
    %v834 = vpack.c.b16 %v780, %v778
    %v835 = vpack.c.b16 %v781, %v779
    %v836 = vpack.c.b16 %v784, %v782
    %v837 = vpack.c.b16 %v785, %v783
    %v838 = vpack.c.b16 %v788, %v786
    %v839 = vpack.c.b16 %v789, %v787
    %v840 = vpack.c.b16 %v792, %v790
    %v841 = vpack.c.b16 %v793, %v791
    %v842 = vpack.c.b16 %v796, %v794
    %v843 = vpack.c.b16 %v797, %v795
    %v844 = vpack.c.b16 %v800, %v798
    %v845 = vpack.c.b16 %v801, %v799
    %v846 = vpack.c.b16 %v804, %v802
    %v847 = vpack.c.b16 %v805, %v803
    %v848 = vpack.c.b16 %v808, %v806
    %v849 = vpack.c.b16 %v809, %v807
    %v850 = vpack.c.b16 %v812, %v810
    %v851 = vpack.c.b16 %v813, %v811
    %v852 = vpack.c.b16 %v816, %v814
    %v853 = vpack.c.b16 %v817, %v815
    %v854 = vpack.c.b16 %v820, %v818
    %v855 = vpack.c.b16 %v821, %v819
    %v856 = vpack.c.b16 %v824, %v822
    %v857 = vpack.c.b16 %v825, %v823
    %890 = vmatprep.subr.bf16.mxu0 %v827
    %891 = vmatpush1.bf16.msra.mxu0 %v826
    %892 = vmatprep.subr.bf16.mxu0 %v829
    %893 = vmatpush1.bf16.msra.mxu0 %v828
    %894 = vmatprep.subr.bf16.mxu0 %v831
    %895 = vmatpush1.bf16.msra.mxu0 %v830
    %896 = vmatprep.subr.bf16.mxu0 %v833
    %897 = vmatpush1.bf16.msra.mxu0 %v832
    %898 = vmatprep.subr.bf16.mxu0 %v835
    %899 = vmatpush1.bf16.msra.mxu0 %v834
    %900 = vmatprep.subr.bf16.mxu0 %v837
    %901 = vmatpush1.bf16.msra.mxu0 %v836
    %902 = vmatprep.subr.bf16.mxu0 %v839
    %903 = vmatpush1.bf16.msra.mxu0 %v838
    %904 = vmatprep.subr.bf16.mxu0 %v841
    %905 = vmatpush1.bf16.msra.mxu0 %v840
    %906 = vmatprep.subr.bf16.mxu0 %v843
    %907 = vmatpush1.bf16.msra.mxu0 %v842
    %908 = vmatprep.subr.bf16.mxu0 %v845
    %909 = vmatpush1.bf16.msra.mxu0 %v844
    %910 = vmatprep.subr.bf16.mxu0 %v847
    %911 = vmatpush1.bf16.msra.mxu0 %v846
    %912 = vmatprep.subr.bf16.mxu0 %v849
    %913 = vmatpush1.bf16.msra.mxu0 %v848
    %914 = vmatprep.subr.bf16.mxu0 %v851
    %915 = vmatpush1.bf16.msra.mxu0 %v850
    %916 = vmatprep.subr.bf16.mxu0 %v853
    %917 = vmatpush1.bf16.msra.mxu0 %v852
    %918 = vmatprep.subr.bf16.mxu0 %v855
    %919 = vmatpush1.bf16.msra.mxu0 %v854
    %920 = vmatprep.subr.bf16.mxu0 %v857
    %921 = vmatpush1.bf16.msra.mxu0 %v856
    %922 = vmatprep.mubr.bf16.mxu0 %v678
    %923 = vmatmul.mubr.bf16.gmra.mrb[0].mxu0 %v677
    %v924 = vpop.f32.mrb[0].mxu0
    %v925 = vadd.f32 %v723, %v924
    %v926 = vpop.f32.mrb[0].mxu0
    %v927 = vadd.f32 %v727, %v926
    %v928 = vpop.f32.mrb[0].mxu0
    %v929 = vadd.f32 %v723, %v928
    %v930 = vpop.f32.mrb[0].mxu0
    %v931 = vadd.f32 %v727, %v930
    %932 = vmatprep.mubr.bf16.mxu0 %v680
    %933 = vmatmul.mubr.bf16.gmra.mrb[0].mxu0 %v679
    %v934 = vpop.f32.mrb[0].mxu0
    %v935 = vadd.f32 %v723, %v934
    %v936 = vpop.f32.mrb[0].mxu0
    %v937 = vadd.f32 %v727, %v936
    %v938 = vpop.f32.mrb[0].mxu0
    %v939 = vadd.f32 %v723, %v938
    %v940 = vpop.f32.mrb[0].mxu0
    %v941 = vadd.f32 %v727, %v940
    %942 = vmatprep.mubr.bf16.mxu0 %v682
    %943 = vmatmul.mubr.bf16.gmra.mrb[0].mxu0 %v681
    %v944 = vpop.f32.mrb[0].mxu0
    %v945 = vadd.f32 %v723, %v944
    %v946 = vpop.f32.mrb[0].mxu0
    %v947 = vadd.f32 %v727, %v946
    %v948 = vpop.f32.mrb[0].mxu0
    %v949 = vadd.f32 %v723, %v948
    %v950 = vpop.f32.mrb[0].mxu0
    %v951 = vadd.f32 %v727, %v950
    %952 = vmatprep.mubr.bf16.mxu0 %v684
    %953 = vmatmul.mubr.bf16.gmra.mrb[0].mxu0 %v683
    %v954 = vpop.f32.mrb[0].mxu0
    %v955 = vadd.f32 %v723, %v954
    %v956 = vpop.f32.mrb[0].mxu0
    %v957 = vadd.f32 %v727, %v956
    %v958 = vpop.f32.mrb[0].mxu0
    %v959 = vadd.f32 %v723, %v958
    %v960 = vpop.f32.mrb[0].mxu0
    %v961 = vadd.f32 %v727, %v960
    %962 = vdwg.mxu0
    %s963 = scalar_lea.vmem %s5, 5
    %v964 = vld [vmem:[%s963] ss:$8 sm:$0x3]
    %s965 = scalar_lea.vmem %s5, 6
    %v966 = vld [vmem:[%s965] ss:$8 sm:$0x3]
    %v967 = vadd.f32 %v925, %v929
    %v968 = vadd.f32 %v967, %v935
    %v969 = vadd.f32 %v968, %v939
    %v970 = vadd.f32 %v969, %v945
    %v971 = vadd.f32 %v970, %v949
    %v972 = vadd.f32 %v971, %v955
    %v973 = vadd.f32 %v972, %v959
    %v974 = vrot.slane %v973, 4
    %v975 = vadd.f32 %v973, %v974
    %v976 = vrot.slane %v975, 2
    %v977 = vadd.f32 %v975, %v976
    %v978 = vrot.slane %v977, 1
    %v979 = vadd.f32 %v977, %v978
    %v980 = vadd.f32 %v927, %v931
    %v981 = vadd.f32 %v980, %v937
    %v982 = vadd.f32 %v981, %v941
    %v983 = vadd.f32 %v982, %v947
    %v984 = vadd.f32 %v983, %v951
    %v985 = vadd.f32 %v984, %v957
    %v986 = vadd.f32 %v985, %v961
    %v987 = vrot.slane %v986, 4
    %v988 = vadd.f32 %v986, %v987
    %v989 = vrot.slane %v988, 2
    %v990 = vadd.f32 %v988, %v989
    %v991 = vrot.slane %v990, 1
    %v992 = vadd.f32 %v990, %v991
    %v993 = vmul.f32 %v979, %v500
    %v994 = vmul.f32 %v992, %v500
    %v995 = vsub.f32 %v925, %v993
    %v996 = vsub.f32 %v927, %v994
    %v997 = vsub.f32 %v929, %v993
    %v998 = vsub.f32 %v931, %v994
    %v999 = vsub.f32 %v935, %v993
    %v1000 = vsub.f32 %v937, %v994
    %v1001 = vsub.f32 %v939, %v993
    %v1002 = vsub.f32 %v941, %v994
    %v1003 = vsub.f32 %v945, %v993
    %v1004 = vsub.f32 %v947, %v994
    %v1005 = vsub.f32 %v949, %v993
    %v1006 = vsub.f32 %v951, %v994
    %v1007 = vsub.f32 %v955, %v993
    %v1008 = vsub.f32 %v957, %v994
    %v1009 = vsub.f32 %v959, %v993
    %v1010 = vsub.f32 %v961, %v994
    %v1011 = vmul.f32 %v995, %v995
    %v1012 = vmul.f32 %v996, %v996
    %v1013 = vmul.f32 %v997, %v997
    %v1014 = vmul.f32 %v998, %v998
    %v1015 = vmul.f32 %v999, %v999
    %v1016 = vmul.f32 %v1000, %v1000
    %v1017 = vmul.f32 %v1001, %v1001
    %v1018 = vmul.f32 %v1002, %v1002
    %v1019 = vmul.f32 %v1003, %v1003
    %v1020 = vmul.f32 %v1004, %v1004
    %v1021 = vmul.f32 %v1005, %v1005
    %v1022 = vmul.f32 %v1006, %v1006
    %v1023 = vmul.f32 %v1007, %v1007
    %v1024 = vmul.f32 %v1008, %v1008
    %v1025 = vmul.f32 %v1009, %v1009
    %v1026 = vmul.f32 %v1010, %v1010
    %v1027 = vadd.f32 %v1011, %v1013
    %v1028 = vadd.f32 %v1027, %v1015
    %v1029 = vadd.f32 %v1028, %v1017
    %v1030 = vadd.f32 %v1029, %v1019
    %v1031 = vadd.f32 %v1030, %v1021
    %v1032 = vadd.f32 %v1031, %v1023
    %v1033 = vadd.f32 %v1032, %v1025
    %v1034 = vrot.slane %v1033, 4
    %v1035 = vadd.f32 %v1033, %v1034
    %v1036 = vrot.slane %v1035, 2
    %v1037 = vadd.f32 %v1035, %v1036
    %v1038 = vrot.slane %v1037, 1
    %v1039 = vadd.f32 %v1037, %v1038
    %v1040 = vadd.f32 %v1012, %v1014
    %v1041 = vadd.f32 %v1040, %v1016
    %v1042 = vadd.f32 %v1041, %v1018
    %v1043 = vadd.f32 %v1042, %v1020
    %v1044 = vadd.f32 %v1043, %v1022
    %v1045 = vadd.f32 %v1044, %v1024
    %v1046 = vadd.f32 %v1045, %v1026
    %v1047 = vrot.slane %v1046, 4
    %v1048 = vadd.f32 %v1046, %v1047
    %v1049 = vrot.slane %v1048, 2
    %v1050 = vadd.f32 %v1048, %v1049
    %v1051 = vrot.slane %v1050, 1
    %v1052 = vadd.f32 %v1050, %v1051
    %v1053 = vmul.f32 %v1039, %v500
    %v1054 = vmul.f32 %v1052, %v500
    %v1055 = vadd.f32 %v1053, 1e-05
    %v1056 = vadd.f32 %v1054, 1e-05
    %v1057 = vrsqrt.pop %v1055
    %v1058 = vrsqrt.pop %v1056
    %v1061 = vcombine.low %v1057, %v1058
    %v1063 = vunpack.c.l.s4 1966171168
    %v1064 = vunpack.c.0.s8 %v1063
    %v1065 = vlaneseq
    %v1066 = vshrl.u32 %v1065, 7
    %v1067 = vsub.s32 %v1064, %v1066
    %v1068 = vrot.slane %v1061, %v1067
    %v1070 = vunpack.c.l.s4 1966171168
    %v1071 = vunpack.c.0.s8 %v1070
    %v1072 = vlaneseq
    %v1073 = vshrl.u32 %v1072, 7
    %v1074 = vsub.s32 %v1071, %v1073
    %v1075 = vrot.slane %v1068, %v1074
    %v1077 = vmul.f32 %v964, %v1075
    %v1079 = vlaneseq
    %v1080 = vshrl.u32 %v1079, 7
    %v1081 = vsub.s32 0, %v1080
    %v1082 = vrot.slane %v1077, %v1081
    %v1083 = vlaneseq
    %v1084 = vshrl.u32 %v1083, 7
    %v1085 = vsub.s32 1, %v1084
    %v1086 = vrot.slane %v1077, %v1085
    %v1089 = vmul.f32 %v993, %v1082
    %v1090 = vmul.f32 %v994, %v1086
    %v1093 = vcombine.low %v1089, %v1090
    %v1095 = vunpack.c.l.s4 1966171168
    %v1096 = vunpack.c.0.s8 %v1095
    %v1097 = vlaneseq
    %v1098 = vshrl.u32 %v1097, 7
    %v1099 = vsub.s32 %v1096, %v1098
    %v1100 = vrot.slane %v1093, %v1099
    %v1102 = vunpack.c.l.s4 1966171168
    %v1103 = vunpack.c.0.s8 %v1102
    %v1104 = vlaneseq
    %v1105 = vshrl.u32 %v1104, 7
    %v1106 = vsub.s32 %v1103, %v1105
    %v1107 = vrot.slane %v1100, %v1106
    %v1109 = vsub.f32 %v966, %v1107
    %v1110 = vmul.f32 %v925, %v1082
    %v1111 = vmul.f32 %v927, %v1086
    %v1112 = vmul.f32 %v929, %v1082
    %v1113 = vmul.f32 %v931, %v1086
    %v1114 = vmul.f32 %v935, %v1082
    %v1115 = vmul.f32 %v937, %v1086
    %v1116 = vmul.f32 %v939, %v1082
    %v1117 = vmul.f32 %v941, %v1086
    %v1118 = vmul.f32 %v945, %v1082
    %v1119 = vmul.f32 %v947, %v1086
    %v1120 = vmul.f32 %v949, %v1082
    %v1121 = vmul.f32 %v951, %v1086
    %v1122 = vmul.f32 %v955, %v1082
    %v1123 = vmul.f32 %v957, %v1086
    %v1124 = vmul.f32 %v959, %v1082
    %v1125 = vmul.f32 %v961, %v1086
    %v1127 = vlaneseq
    %v1128 = vshrl.u32 %v1127, 7
    %v1129 = vsub.s32 0, %v1128
    %v1130 = vrot.slane %v1109, %v1129
    %v1131 = vlaneseq
    %v1132 = vshrl.u32 %v1131, 7
    %v1133 = vsub.s32 1, %v1132
    %v1134 = vrot.slane %v1109, %v1133
    %v1137 = vadd.f32 %v1110, %v1130
    %v1138 = vadd.f32 %v1111, %v1134
    %v1139 = vadd.f32 %v1112, %v1130
    %v1140 = vadd.f32 %v1113, %v1134
    %v1141 = vadd.f32 %v1114, %v1130
    %v1142 = vadd.f32 %v1115, %v1134
    %v1143 = vadd.f32 %v1116, %v1130
    %v1144 = vadd.f32 %v1117, %v1134
    %v1145 = vadd.f32 %v1118, %v1130
    %v1146 = vadd.f32 %v1119, %v1134
    %v1147 = vadd.f32 %v1120, %v1130
    %v1148 = vadd.f32 %v1121, %v1134
    %v1149 = vadd.f32 %v1122, %v1130
    %v1150 = vadd.f32 %v1123, %v1134
    %v1151 = vadd.f32 %v1124, %v1130
    %v1152 = vadd.f32 %v1125, %v1134
    %v1153 = vunpack.c.l.bf16 %v677
    %v1154 = vunpack.c.l.bf16 %v678
    %v1155 = vunpack.c.h.bf16 %v677
    %v1156 = vunpack.c.h.bf16 %v678
    %v1157 = vunpack.c.l.bf16 %v679
    %v1158 = vunpack.c.l.bf16 %v680
    %v1159 = vunpack.c.h.bf16 %v679
    %v1160 = vunpack.c.h.bf16 %v680
    %v1161 = vunpack.c.l.bf16 %v681
    %v1162 = vunpack.c.l.bf16 %v682
    %v1163 = vunpack.c.h.bf16 %v681
    %v1164 = vunpack.c.h.bf16 %v682
    %v1165 = vunpack.c.l.bf16 %v683
    %v1166 = vunpack.c.l.bf16 %v684
    %v1167 = vunpack.c.h.bf16 %v683
    %v1168 = vunpack.c.h.bf16 %v684
    %v1169 = vadd.f32 %v1137, %v1153
    %v1170 = vadd.f32 %v1138, %v1154
    %v1171 = vadd.f32 %v1139, %v1155
    %v1172 = vadd.f32 %v1140, %v1156
    %v1173 = vadd.f32 %v1141, %v1157
    %v1174 = vadd.f32 %v1142, %v1158
    %v1175 = vadd.f32 %v1143, %v1159
    %v1176 = vadd.f32 %v1144, %v1160
    %v1177 = vadd.f32 %v1145, %v1161
    %v1178 = vadd.f32 %v1146, %v1162
    %v1179 = vadd.f32 %v1147, %v1163
    %v1180 = vadd.f32 %v1148, %v1164
    %v1181 = vadd.f32 %v1149, %v1165
    %v1182 = vadd.f32 %v1150, %v1166
    %v1183 = vadd.f32 %v1151, %v1167
    %v1184 = vadd.f32 %v1152, %v1168
    %v1185 = vmax.f32 %v1169, 0.0
    %v1186 = vmax.f32 %v1170, 0.0
    %v1187 = vmax.f32 %v1171, 0.0
    %v1188 = vmax.f32 %v1172, 0.0
    %v1189 = vmax.f32 %v1173, 0.0
    %v1190 = vmax.f32 %v1174, 0.0
    %v1191 = vmax.f32 %v1175, 0.0
    %v1192 = vmax.f32 %v1176, 0.0
    %v1193 = vmax.f32 %v1177, 0.0
    %v1194 = vmax.f32 %v1178, 0.0
    %v1195 = vmax.f32 %v1179, 0.0
    %v1196 = vmax.f32 %v1180, 0.0
    %v1197 = vmax.f32 %v1181, 0.0
    %v1198 = vmax.f32 %v1182, 0.0
    %v1199 = vmax.f32 %v1183, 0.0
    %v1200 = vmax.f32 %v1184, 0.0
    %v1201 = vpack.c.bf16 %v1187, %v1185
    %v1202 = vpack.c.bf16 %v1188, %v1186
    %v1203 = vpack.c.bf16 %v1191, %v1189
    %v1204 = vpack.c.bf16 %v1192, %v1190
    %v1205 = vpack.c.bf16 %v1195, %v1193
    %v1206 = vpack.c.bf16 %v1196, %v1194
    %v1207 = vpack.c.bf16 %v1199, %v1197
    %v1208 = vpack.c.bf16 %v1200, %v1198
    %s1209 = scalar_lea.vmem [#allocation4], 256
    %v1210 = vld [vmem:[%s1209] sm:$0xff]
    %v1211 = vld [vmem:[%s1209 + $0x8] sm:$0xff]
    %v1212 = vld [vmem:[%s1209 + $0x10] sm:$0xff]
    %v1213 = vld [vmem:[%s1209 + $0x18] sm:$0xff]
    %v1214 = vld [vmem:[%s1209 + $0x20] sm:$0xff]
    %v1215 = vld [vmem:[%s1209 + $0x28] sm:$0xff]
    %v1216 = vld [vmem:[%s1209 + $0x30] sm:$0xff]
    %v1217 = vld [vmem:[%s1209 + $0x38] sm:$0xff]
    %v1218 = vld [vmem:[%s1209 + $0x40] sm:$0xff]
    %v1219 = vld [vmem:[%s1209 + $0x48] sm:$0xff]
    %v1220 = vld [vmem:[%s1209 + $0x50] sm:$0xff]
    %v1221 = vld [vmem:[%s1209 + $0x58] sm:$0xff]
    %v1222 = vld [vmem:[%s1209 + $0x60] sm:$0xff]
    %v1223 = vld [vmem:[%s1209 + $0x68] sm:$0xff]
    %v1224 = vld [vmem:[%s1209 + $0x70] sm:$0xff]
    %v1225 = vld [vmem:[%s1209 + $0x78] sm:$0xff]
    %v1226 = vld [vmem:[%s1209 + $0x80] sm:$0xff]
    %v1227 = vld [vmem:[%s1209 + $0x88] sm:$0xff]
    %v1228 = vld [vmem:[%s1209 + $0x90] sm:$0xff]
    %v1229 = vld [vmem:[%s1209 + $0x98] sm:$0xff]
    %v1230 = vld [vmem:[%s1209 + $0xa0] sm:$0xff]
    %v1231 = vld [vmem:[%s1209 + $0xa8] sm:$0xff]
    %v1232 = vld [vmem:[%s1209 + $0xb0] sm:$0xff]
    %v1233 = vld [vmem:[%s1209 + $0xb8] sm:$0xff]
    %v1234 = vld [vmem:[%s1209 + $0xc0] sm:$0xff]
    %v1235 = vld [vmem:[%s1209 + $0xc8] sm:$0xff]
    %v1236 = vld [vmem:[%s1209 + $0xd0] sm:$0xff]
    %v1237 = vld [vmem:[%s1209 + $0xd8] sm:$0xff]
    %v1238 = vld [vmem:[%s1209 + $0xe0] sm:$0xff]
    %v1239 = vld [vmem:[%s1209 + $0xe8] sm:$0xff]
    %v1240 = vld [vmem:[%s1209 + $0xf0] sm:$0xff]
    %v1241 = vld [vmem:[%s1209 + $0xf8] sm:$0xff]
    %s1242 = scalar_lea.vmem %s5, 7
    %v1243 = vld [vmem:[%s1242] ss:$8 sm:$0x3]
    %v1245 = vlaneseq
    %v1246 = vshrl.u32 %v1245, 7
    %v1247 = vsub.s32 0, %v1246
    %v1248 = vrot.slane %v1243, %v1247
    %v1249 = vlaneseq
    %v1250 = vshrl.u32 %v1249, 7
    %v1251 = vsub.s32 1, %v1250
    %v1252 = vrot.slane %v1243, %v1251
    %v1287 = vunpack.c.l.b16 %v1210
    %v1288 = vunpack.c.h.b16 %v1210
    %v1289 = vunpack.c.l.b16 %v1211
    %v1290 = vunpack.c.h.b16 %v1211
    %v1291 = vunpack.c.l.b16 %v1212
    %v1292 = vunpack.c.h.b16 %v1212
    %v1293 = vunpack.c.l.b16 %v1213
    %v1294 = vunpack.c.h.b16 %v1213
    %v1295 = vunpack.c.l.b16 %v1214
    %v1296 = vunpack.c.h.b16 %v1214
    %v1297 = vunpack.c.l.b16 %v1215
    %v1298 = vunpack.c.h.b16 %v1215
    %v1299 = vunpack.c.l.b16 %v1216
    %v1300 = vunpack.c.h.b16 %v1216
    %v1301 = vunpack.c.l.b16 %v1217
    %v1302 = vunpack.c.h.b16 %v1217
    %v1303 = vunpack.c.l.b16 %v1218
    %v1304 = vunpack.c.h.b16 %v1218
    %v1305 = vunpack.c.l.b16 %v1219
    %v1306 = vunpack.c.h.b16 %v1219
    %v1307 = vunpack.c.l.b16 %v1220
    %v1308 = vunpack.c.h.b16 %v1220
    %v1309 = vunpack.c.l.b16 %v1221
    %v1310 = vunpack.c.h.b16 %v1221
    %v1311 = vunpack.c.l.b16 %v1222
    %v1312 = vunpack.c.h.b16 %v1222
    %v1313 = vunpack.c.l.b16 %v1223
    %v1314 = vunpack.c.h.b16 %v1223
    %v1315 = vunpack.c.l.b16 %v1224
    %v1316 = vunpack.c.h.b16 %v1224
    %v1317 = vunpack.c.l.b16 %v1225
    %v1318 = vunpack.c.h.b16 %v1225
    %v1319 = vunpack.c.l.b16 %v1226
    %v1320 = vunpack.c.h.b16 %v1226
    %v1321 = vunpack.c.l.b16 %v1227
    %v1322 = vunpack.c.h.b16 %v1227
    %v1323 = vunpack.c.l.b16 %v1228
    %v1324 = vunpack.c.h.b16 %v1228
    %v1325 = vunpack.c.l.b16 %v1229
    %v1326 = vunpack.c.h.b16 %v1229
    %v1327 = vunpack.c.l.b16 %v1230
    %v1328 = vunpack.c.h.b16 %v1230
    %v1329 = vunpack.c.l.b16 %v1231
    %v1330 = vunpack.c.h.b16 %v1231
    %v1331 = vunpack.c.l.b16 %v1232
    %v1332 = vunpack.c.h.b16 %v1232
    %v1333 = vunpack.c.l.b16 %v1233
    %v1334 = vunpack.c.h.b16 %v1233
    %v1335 = vunpack.c.l.b16 %v1234
    %v1336 = vunpack.c.h.b16 %v1234
    %v1337 = vunpack.c.l.b16 %v1235
    %v1338 = vunpack.c.h.b16 %v1235
    %v1339 = vunpack.c.l.b16 %v1236
    %v1340 = vunpack.c.h.b16 %v1236
    %v1341 = vunpack.c.l.b16 %v1237
    %v1342 = vunpack.c.h.b16 %v1237
    %v1343 = vunpack.c.l.b16 %v1238
    %v1344 = vunpack.c.h.b16 %v1238
    %v1345 = vunpack.c.l.b16 %v1239
    %v1346 = vunpack.c.h.b16 %v1239
    %v1347 = vunpack.c.l.b16 %v1240
    %v1348 = vunpack.c.h.b16 %v1240
    %v1349 = vunpack.c.l.b16 %v1241
    %v1350 = vunpack.c.h.b16 %v1241
    %v1351 = vpack.c.b16 %v1289, %v1287
    %v1352 = vpack.c.b16 %v1290, %v1288
    %v1353 = vpack.c.b16 %v1293, %v1291
    %v1354 = vpack.c.b16 %v1294, %v1292
    %v1355 = vpack.c.b16 %v1297, %v1295
    %v1356 = vpack.c.b16 %v1298, %v1296
    %v1357 = vpack.c.b16 %v1301, %v1299
    %v1358 = vpack.c.b16 %v1302, %v1300
    %v1359 = vpack.c.b16 %v1305, %v1303
    %v1360 = vpack.c.b16 %v1306, %v1304
    %v1361 = vpack.c.b16 %v1309, %v1307
    %v1362 = vpack.c.b16 %v1310, %v1308
    %v1363 = vpack.c.b16 %v1313, %v1311
    %v1364 = vpack.c.b16 %v1314, %v1312
    %v1365 = vpack.c.b16 %v1317, %v1315
    %v1366 = vpack.c.b16 %v1318, %v1316
    %v1367 = vpack.c.b16 %v1321, %v1319
    %v1368 = vpack.c.b16 %v1322, %v1320
    %v1369 = vpack.c.b16 %v1325, %v1323
    %v1370 = vpack.c.b16 %v1326, %v1324
    %v1371 = vpack.c.b16 %v1329, %v1327
    %v1372 = vpack.c.b16 %v1330, %v1328
    %v1373 = vpack.c.b16 %v1333, %v1331
    %v1374 = vpack.c.b16 %v1334, %v1332
    %v1375 = vpack.c.b16 %v1337, %v1335
    %v1376 = vpack.c.b16 %v1338, %v1336
    %v1377 = vpack.c.b16 %v1341, %v1339
    %v1378 = vpack.c.b16 %v1342, %v1340
    %v1379 = vpack.c.b16 %v1345, %v1343
    %v1380 = vpack.c.b16 %v1346, %v1344
    %v1381 = vpack.c.b16 %v1349, %v1347
    %v1382 = vpack.c.b16 %v1350, %v1348
    %1415 = vmatprep.subr.bf16.mxu0 %v1352
    %1416 = vmatpush1.bf16.msra.mxu0 %v1351
    %1417 = vmatprep.subr.bf16.mxu0 %v1354
    %1418 = vmatpush1.bf16.msra.mxu0 %v1353
    %1419 = vmatprep.subr.bf16.mxu0 %v1356
    %1420 = vmatpush1.bf16.msra.mxu0 %v1355
    %1421 = vmatprep.subr.bf16.mxu0 %v1358
    %1422 = vmatpush1.bf16.msra.mxu0 %v1357
    %1423 = vmatprep.subr.bf16.mxu0 %v1360
    %1424 = vmatpush1.bf16.msra.mxu0 %v1359
    %1425 = vmatprep.subr.bf16.mxu0 %v1362
    %1426 = vmatpush1.bf16.msra.mxu0 %v1361
    %1427 = vmatprep.subr.bf16.mxu0 %v1364
    %1428 = vmatpush1.bf16.msra.mxu0 %v1363
    %1429 = vmatprep.subr.bf16.mxu0 %v1366
    %1430 = vmatpush1.bf16.msra.mxu0 %v1365
    %1431 = vmatprep.subr.bf16.mxu0 %v1368
    %1432 = vmatpush1.bf16.msra.mxu0 %v1367
    %1433 = vmatprep.subr.bf16.mxu0 %v1370
    %1434 = vmatpush1.bf16.msra.mxu0 %v1369
    %1435 = vmatprep.subr.bf16.mxu0 %v1372
    %1436 = vmatpush1.bf16.msra.mxu0 %v1371
    %1437 = vmatprep.subr.bf16.mxu0 %v1374
    %1438 = vmatpush1.bf16.msra.mxu0 %v1373
    %1439 = vmatprep.subr.bf16.mxu0 %v1376
    %1440 = vmatpush1.bf16.msra.mxu0 %v1375
    %1441 = vmatprep.subr.bf16.mxu0 %v1378
    %1442 = vmatpush1.bf16.msra.mxu0 %v1377
    %1443 = vmatprep.subr.bf16.mxu0 %v1380
    %1444 = vmatpush1.bf16.msra.mxu0 %v1379
    %1445 = vmatprep.subr.bf16.mxu0 %v1382
    %1446 = vmatpush1.bf16.msra.mxu0 %v1381
    %1447 = vmatprep.mubr.bf16.mxu0 %v1202
    %1448 = vmatmul.mubr.bf16.gmra.mrb[0].mxu0 %v1201
    %v1449 = vpop.f32.mrb[0].mxu0
    %v1450 = vadd.f32 %v1248, %v1449
    %v1451 = vpop.f32.mrb[0].mxu0
    %v1452 = vadd.f32 %v1252, %v1451
    %v1453 = vpop.f32.mrb[0].mxu0
    %v1454 = vadd.f32 %v1248, %v1453
    %v1455 = vpop.f32.mrb[0].mxu0
    %v1456 = vadd.f32 %v1252, %v1455
    %1457 = vmatprep.mubr.bf16.mxu0 %v1204
    %1458 = vmatmul.mubr.bf16.gmra.mrb[0].mxu0 %v1203
    %v1459 = vpop.f32.mrb[0].mxu0
    %v1460 = vadd.f32 %v1248, %v1459
    %v1461 = vpop.f32.mrb[0].mxu0
    %v1462 = vadd.f32 %v1252, %v1461
    %v1463 = vpop.f32.mrb[0].mxu0
    %v1464 = vadd.f32 %v1248, %v1463
    %v1465 = vpop.f32.mrb[0].mxu0
    %v1466 = vadd.f32 %v1252, %v1465
    %1467 = vmatprep.mubr.bf16.mxu0 %v1206
    %1468 = vmatmul.mubr.bf16.gmra.mrb[0].mxu0 %v1205
    %v1469 = vpop.f32.mrb[0].mxu0
    %v1470 = vadd.f32 %v1248, %v1469
    %v1471 = vpop.f32.mrb[0].mxu0
    %v1472 = vadd.f32 %v1252, %v1471
    %v1473 = vpop.f32.mrb[0].mxu0
    %v1474 = vadd.f32 %v1248, %v1473
    %v1475 = vpop.f32.mrb[0].mxu0
    %v1476 = vadd.f32 %v1252, %v1475
    %1477 = vmatprep.mubr.bf16.mxu0 %v1208
    %1478 = vmatmul.mubr.bf16.gmra.mrb[0].mxu0 %v1207
    %v1479 = vpop.f32.mrb[0].mxu0
    %v1480 = vadd.f32 %v1248, %v1479
    %v1481 = vpop.f32.mrb[0].mxu0
    %v1482 = vadd.f32 %v1252, %v1481
    %v1483 = vpop.f32.mrb[0].mxu0
    %v1484 = vadd.f32 %v1248, %v1483
    %v1485 = vpop.f32.mrb[0].mxu0
    %v1486 = vadd.f32 %v1252, %v1485
    %1487 = vdwg.mxu0
    %s1488 = scalar_lea.vmem %s5, 16
    %v1489 = vld [vmem:[%s1488] ss:$8 sm:$0x3]
    %s1490 = scalar_lea.vmem %s5, 17
    %v1491 = vld [vmem:[%s1490] ss:$8 sm:$0x3]
    %v1492 = vadd.f32 %v1450, %v1454
    %v1493 = vadd.f32 %v1492, %v1460
    %v1494 = vadd.f32 %v1493, %v1464
    %v1495 = vadd.f32 %v1494, %v1470
    %v1496 = vadd.f32 %v1495, %v1474
    %v1497 = vadd.f32 %v1496, %v1480
    %v1498 = vadd.f32 %v1497, %v1484
    %v1499 = vrot.slane %v1498, 4
    %v1500 = vadd.f32 %v1498, %v1499
    %v1501 = vrot.slane %v1500, 2
    %v1502 = vadd.f32 %v1500, %v1501
    %v1503 = vrot.slane %v1502, 1
    %v1504 = vadd.f32 %v1502, %v1503
    %v1505 = vadd.f32 %v1452, %v1456
    %v1506 = vadd.f32 %v1505, %v1462
    %v1507 = vadd.f32 %v1506, %v1466
    %v1508 = vadd.f32 %v1507, %v1472
    %v1509 = vadd.f32 %v1508, %v1476
    %v1510 = vadd.f32 %v1509, %v1482
    %v1511 = vadd.f32 %v1510, %v1486
    %v1512 = vrot.slane %v1511, 4
    %v1513 = vadd.f32 %v1511, %v1512
    %v1514 = vrot.slane %v1513, 2
    %v1515 = vadd.f32 %v1513, %v1514
    %v1516 = vrot.slane %v1515, 1
    %v1517 = vadd.f32 %v1515, %v1516
    %v1518 = vmul.f32 %v1504, %v500
    %v1519 = vmul.f32 %v1517, %v500
    %v1520 = vsub.f32 %v1450, %v1518
    %v1521 = vsub.f32 %v1452, %v1519
    %v1522 = vsub.f32 %v1454, %v1518
    %v1523 = vsub.f32 %v1456, %v1519
    %v1524 = vsub.f32 %v1460, %v1518
    %v1525 = vsub.f32 %v1462, %v1519
    %v1526 = vsub.f32 %v1464, %v1518
    %v1527 = vsub.f32 %v1466, %v1519
    %v1528 = vsub.f32 %v1470, %v1518
    %v1529 = vsub.f32 %v1472, %v1519
    %v1530 = vsub.f32 %v1474, %v1518
    %v1531 = vsub.f32 %v1476, %v1519
    %v1532 = vsub.f32 %v1480, %v1518
    %v1533 = vsub.f32 %v1482, %v1519
    %v1534 = vsub.f32 %v1484, %v1518
    %v1535 = vsub.f32 %v1486, %v1519
    %v1536 = vmul.f32 %v1520, %v1520
    %v1537 = vmul.f32 %v1521, %v1521
    %v1538 = vmul.f32 %v1522, %v1522
    %v1539 = vmul.f32 %v1523, %v1523
    %v1540 = vmul.f32 %v1524, %v1524
    %v1541 = vmul.f32 %v1525, %v1525
    %v1542 = vmul.f32 %v1526, %v1526
    %v1543 = vmul.f32 %v1527, %v1527
    %v1544 = vmul.f32 %v1528, %v1528
    %v1545 = vmul.f32 %v1529, %v1529
    %v1546 = vmul.f32 %v1530, %v1530
    %v1547 = vmul.f32 %v1531, %v1531
    %v1548 = vmul.f32 %v1532, %v1532
    %v1549 = vmul.f32 %v1533, %v1533
    %v1550 = vmul.f32 %v1534, %v1534
    %v1551 = vmul.f32 %v1535, %v1535
    %v1552 = vadd.f32 %v1536, %v1538
    %v1553 = vadd.f32 %v1552, %v1540
    %v1554 = vadd.f32 %v1553, %v1542
    %v1555 = vadd.f32 %v1554, %v1544
    %v1556 = vadd.f32 %v1555, %v1546
    %v1557 = vadd.f32 %v1556, %v1548
    %v1558 = vadd.f32 %v1557, %v1550
    %v1559 = vrot.slane %v1558, 4
    %v1560 = vadd.f32 %v1558, %v1559
    %v1561 = vrot.slane %v1560, 2
    %v1562 = vadd.f32 %v1560, %v1561
    %v1563 = vrot.slane %v1562, 1
    %v1564 = vadd.f32 %v1562, %v1563
    %v1565 = vadd.f32 %v1537, %v1539
    %v1566 = vadd.f32 %v1565, %v1541
    %v1567 = vadd.f32 %v1566, %v1543
    %v1568 = vadd.f32 %v1567, %v1545
    %v1569 = vadd.f32 %v1568, %v1547
    %v1570 = vadd.f32 %v1569, %v1549
    %v1571 = vadd.f32 %v1570, %v1551
    %v1572 = vrot.slane %v1571, 4
    %v1573 = vadd.f32 %v1571, %v1572
    %v1574 = vrot.slane %v1573, 2
    %v1575 = vadd.f32 %v1573, %v1574
    %v1576 = vrot.slane %v1575, 1
    %v1577 = vadd.f32 %v1575, %v1576
    %v1578 = vmul.f32 %v1564, %v500
    %v1579 = vmul.f32 %v1577, %v500
    %v1580 = vadd.f32 %v1578, 1e-05
    %v1581 = vadd.f32 %v1579, 1e-05
    %v1582 = vrsqrt.pop %v1580
    %v1583 = vrsqrt.pop %v1581
    %v1586 = vcombine.low %v1582, %v1583
    %v1588 = vunpack.c.l.s4 1966171168
    %v1589 = vunpack.c.0.s8 %v1588
    %v1590 = vlaneseq
    %v1591 = vshrl.u32 %v1590, 7
    %v1592 = vsub.s32 %v1589, %v1591
    %v1593 = vrot.slane %v1586, %v1592
    %v1595 = vunpack.c.l.s4 1966171168
    %v1596 = vunpack.c.0.s8 %v1595
    %v1597 = vlaneseq
    %v1598 = vshrl.u32 %v1597, 7
    %v1599 = vsub.s32 %v1596, %v1598
    %v1600 = vrot.slane %v1593, %v1599
    %v1602 = vmul.f32 %v1489, %v1600
    %v1604 = vlaneseq
    %v1605 = vshrl.u32 %v1604, 7
    %v1606 = vsub.s32 0, %v1605
    %v1607 = vrot.slane %v1602, %v1606
    %v1608 = vlaneseq
    %v1609 = vshrl.u32 %v1608, 7
    %v1610 = vsub.s32 1, %v1609
    %v1611 = vrot.slane %v1602, %v1610
    %v1614 = vmul.f32 %v1518, %v1607
    %v1615 = vmul.f32 %v1519, %v1611
    %v1618 = vcombine.low %v1614, %v1615
    %v1620 = vunpack.c.l.s4 1966171168
    %v1621 = vunpack.c.0.s8 %v1620
    %v1622 = vlaneseq
    %v1623 = vshrl.u32 %v1622, 7
    %v1624 = vsub.s32 %v1621, %v1623
    %v1625 = vrot.slane %v1618, %v1624
    %v1627 = vunpack.c.l.s4 1966171168
    %v1628 = vunpack.c.0.s8 %v1627
    %v1629 = vlaneseq
    %v1630 = vshrl.u32 %v1629, 7
    %v1631 = vsub.s32 %v1628, %v1630
    %v1632 = vrot.slane %v1625, %v1631
    %v1634 = vsub.f32 %v1491, %v1632
    %v1635 = vmul.f32 %v1450, %v1607
    %v1636 = vmul.f32 %v1452, %v1611
    %v1637 = vmul.f32 %v1454, %v1607
    %v1638 = vmul.f32 %v1456, %v1611
    %v1639 = vmul.f32 %v1460, %v1607
    %v1640 = vmul.f32 %v1462, %v1611
    %v1641 = vmul.f32 %v1464, %v1607
    %v1642 = vmul.f32 %v1466, %v1611
    %v1643 = vmul.f32 %v1470, %v1607
    %v1644 = vmul.f32 %v1472, %v1611
    %v1645 = vmul.f32 %v1474, %v1607
    %v1646 = vmul.f32 %v1476, %v1611
    %v1647 = vmul.f32 %v1480, %v1607
    %v1648 = vmul.f32 %v1482, %v1611
    %v1649 = vmul.f32 %v1484, %v1607
    %v1650 = vmul.f32 %v1486, %v1611
    %v1652 = vlaneseq
    %v1653 = vshrl.u32 %v1652, 7
    %v1654 = vsub.s32 0, %v1653
    %v1655 = vrot.slane %v1634, %v1654
    %v1656 = vlaneseq
    %v1657 = vshrl.u32 %v1656, 7
    %v1658 = vsub.s32 1, %v1657
    %v1659 = vrot.slane %v1634, %v1658
    %v1662 = vadd.f32 %v1635, %v1655
    %v1663 = vadd.f32 %v1636, %v1659
    %v1664 = vadd.f32 %v1637, %v1655
    %v1665 = vadd.f32 %v1638, %v1659
    %v1666 = vadd.f32 %v1639, %v1655
    %v1667 = vadd.f32 %v1640, %v1659
    %v1668 = vadd.f32 %v1641, %v1655
    %v1669 = vadd.f32 %v1642, %v1659
    %v1670 = vadd.f32 %v1643, %v1655
    %v1671 = vadd.f32 %v1644, %v1659
    %v1672 = vadd.f32 %v1645, %v1655
    %v1673 = vadd.f32 %v1646, %v1659
    %v1674 = vadd.f32 %v1647, %v1655
    %v1675 = vadd.f32 %v1648, %v1659
    %v1676 = vadd.f32 %v1649, %v1655
    %v1677 = vadd.f32 %v1650, %v1659
    %v1678 = vunpack.c.l.bf16 %v1201
    %v1679 = vunpack.c.l.bf16 %v1202
    %v1680 = vunpack.c.h.bf16 %v1201
    %v1681 = vunpack.c.h.bf16 %v1202
    %v1682 = vunpack.c.l.bf16 %v1203
    %v1683 = vunpack.c.l.bf16 %v1204
    %v1684 = vunpack.c.h.bf16 %v1203
    %v1685 = vunpack.c.h.bf16 %v1204
    %v1686 = vunpack.c.l.bf16 %v1205
    %v1687 = vunpack.c.l.bf16 %v1206
    %v1688 = vunpack.c.h.bf16 %v1205
    %v1689 = vunpack.c.h.bf16 %v1206
    %v1690 = vunpack.c.l.bf16 %v1207
    %v1691 = vunpack.c.l.bf16 %v1208
    %v1692 = vunpack.c.h.bf16 %v1207
    %v1693 = vunpack.c.h.bf16 %v1208
    %v1694 = vadd.f32 %v1662, %v1678
    %v1695 = vadd.f32 %v1663, %v1679
    %v1696 = vadd.f32 %v1664, %v1680
    %v1697 = vadd.f32 %v1665, %v1681
    %v1698 = vadd.f32 %v1666, %v1682
    %v1699 = vadd.f32 %v1667, %v1683
    %v1700 = vadd.f32 %v1668, %v1684
    %v1701 = vadd.f32 %v1669, %v1685
    %v1702 = vadd.f32 %v1670, %v1686
    %v1703 = vadd.f32 %v1671, %v1687
    %v1704 = vadd.f32 %v1672, %v1688
    %v1705 = vadd.f32 %v1673, %v1689
    %v1706 = vadd.f32 %v1674, %v1690
    %v1707 = vadd.f32 %v1675, %v1691
    %v1708 = vadd.f32 %v1676, %v1692
    %v1709 = vadd.f32 %v1677, %v1693
    %v1710 = vmax.f32 %v1694, 0.0
    %v1711 = vmax.f32 %v1695, 0.0
    %v1712 = vmax.f32 %v1696, 0.0
    %v1713 = vmax.f32 %v1697, 0.0
    %v1714 = vmax.f32 %v1698, 0.0
    %v1715 = vmax.f32 %v1699, 0.0
    %v1716 = vmax.f32 %v1700, 0.0
    %v1717 = vmax.f32 %v1701, 0.0
    %v1718 = vmax.f32 %v1702, 0.0
    %v1719 = vmax.f32 %v1703, 0.0
    %v1720 = vmax.f32 %v1704, 0.0
    %v1721 = vmax.f32 %v1705, 0.0
    %v1722 = vmax.f32 %v1706, 0.0
    %v1723 = vmax.f32 %v1707, 0.0
    %v1724 = vmax.f32 %v1708, 0.0
    %v1725 = vmax.f32 %v1709, 0.0
    %v1726 = vpack.c.bf16 %v1712, %v1710
    %v1727 = vpack.c.bf16 %v1713, %v1711
    %v1728 = vpack.c.bf16 %v1716, %v1714
    %v1729 = vpack.c.bf16 %v1717, %v1715
    %v1730 = vpack.c.bf16 %v1720, %v1718
    %v1731 = vpack.c.bf16 %v1721, %v1719
    %v1732 = vpack.c.bf16 %v1724, %v1722
    %v1733 = vpack.c.bf16 %v1725, %v1723
    %s1734 = scalar_lea.vmem [#allocation4], 512
    %v1735 = vld [vmem:[%s1734] sm:$0xff]
    %v1736 = vld [vmem:[%s1734 + $0x8] sm:$0xff]
    %v1737 = vld [vmem:[%s1734 + $0x10] sm:$0xff]
    %v1738 = vld [vmem:[%s1734 + $0x18] sm:$0xff]
    %v1739 = vld [vmem:[%s1734 + $0x20] sm:$0xff]
    %v1740 = vld [vmem:[%s1734 + $0x28] sm:$0xff]
    %v1741 = vld [vmem:[%s1734 + $0x30] sm:$0xff]
    %v1742 = vld [vmem:[%s1734 + $0x38] sm:$0xff]
    %v1743 = vld [vmem:[%s1734 + $0x40] sm:$0xff]
    %v1744 = vld [vmem:[%s1734 + $0x48] sm:$0xff]
    %v1745 = vld [vmem:[%s1734 + $0x50] sm:$0xff]
    %v1746 = vld [vmem:[%s1734 + $0x58] sm:$0xff]
    %v1747 = vld [vmem:[%s1734 + $0x60] sm:$0xff]
    %v1748 = vld [vmem:[%s1734 + $0x68] sm:$0xff]
    %v1749 = vld [vmem:[%s1734 + $0x70] sm:$0xff]
    %v1750 = vld [vmem:[%s1734 + $0x78] sm:$0xff]
    %v1751 = vld [vmem:[%s1734 + $0x80] sm:$0xff]
    %v1752 = vld [vmem:[%s1734 + $0x88] sm:$0xff]
    %v1753 = vld [vmem:[%s1734 + $0x90] sm:$0xff]
    %v1754 = vld [vmem:[%s1734 + $0x98] sm:$0xff]
    %v1755 = vld [vmem:[%s1734 + $0xa0] sm:$0xff]
    %v1756 = vld [vmem:[%s1734 + $0xa8] sm:$0xff]
    %v1757 = vld [vmem:[%s1734 + $0xb0] sm:$0xff]
    %v1758 = vld [vmem:[%s1734 + $0xb8] sm:$0xff]
    %v1759 = vld [vmem:[%s1734 + $0xc0] sm:$0xff]
    %v1760 = vld [vmem:[%s1734 + $0xc8] sm:$0xff]
    %v1761 = vld [vmem:[%s1734 + $0xd0] sm:$0xff]
    %v1762 = vld [vmem:[%s1734 + $0xd8] sm:$0xff]
    %v1763 = vld [vmem:[%s1734 + $0xe0] sm:$0xff]
    %v1764 = vld [vmem:[%s1734 + $0xe8] sm:$0xff]
    %v1765 = vld [vmem:[%s1734 + $0xf0] sm:$0xff]
    %v1766 = vld [vmem:[%s1734 + $0xf8] sm:$0xff]
    %s1767 = scalar_lea.vmem %s5, 18
    %v1768 = vld [vmem:[%s1767] ss:$8 sm:$0x3]
    %v1770 = vlaneseq
    %v1771 = vshrl.u32 %v1770, 7
    %v1772 = vsub.s32 0, %v1771
    %v1773 = vrot.slane %v1768, %v1772
    %v1774 = vlaneseq
    %v1775 = vshrl.u32 %v1774, 7
    %v1776 = vsub.s32 1, %v1775
    %v1777 = vrot.slane %v1768, %v1776
    %v1812 = vunpack.c.l.b16 %v1735
    %v1813 = vunpack.c.h.b16 %v1735
    %v1814 = vunpack.c.l.b16 %v1736
    %v1815 = vunpack.c.h.b16 %v1736
    %v1816 = vunpack.c.l.b16 %v1737
    %v1817 = vunpack.c.h.b16 %v1737
    %v1818 = vunpack.c.l.b16 %v1738
    %v1819 = vunpack.c.h.b16 %v1738
    %v1820 = vunpack.c.l.b16 %v1739
    %v1821 = vunpack.c.h.b16 %v1739
    %v1822 = vunpack.c.l.b16 %v1740
    %v1823 = vunpack.c.h.b16 %v1740
    %v1824 = vunpack.c.l.b16 %v1741
    %v1825 = vunpack.c.h.b16 %v1741
    %v1826 = vunpack.c.l.b16 %v1742
    %v1827 = vunpack.c.h.b16 %v1742
    %v1828 = vunpack.c.l.b16 %v1743
    %v1829 = vunpack.c.h.b16 %v1743
    %v1830 = vunpack.c.l.b16 %v1744
    %v1831 = vunpack.c.h.b16 %v1744
    %v1832 = vunpack.c.l.b16 %v1745
    %v1833 = vunpack.c.h.b16 %v1745
    %v1834 = vunpack.c.l.b16 %v1746
    %v1835 = vunpack.c.h.b16 %v1746
    %v1836 = vunpack.c.l.b16 %v1747
    %v1837 = vunpack.c.h.b16 %v1747
    %v1838 = vunpack.c.l.b16 %v1748
    %v1839 = vunpack.c.h.b16 %v1748
    %v1840 = vunpack.c.l.b16 %v1749
    %v1841 = vunpack.c.h.b16 %v1749
    %v1842 = vunpack.c.l.b16 %v1750
    %v1843 = vunpack.c.h.b16 %v1750
    %v1844 = vunpack.c.l.b16 %v1751
    %v1845 = vunpack.c.h.b16 %v1751
    %v1846 = vunpack.c.l.b16 %v1752
    %v1847 = vunpack.c.h.b16 %v1752
    %v1848 = vunpack.c.l.b16 %v1753
    %v1849 = vunpack.c.h.b16 %v1753
    %v1850 = vunpack.c.l.b16 %v1754
    %v1851 = vunpack.c.h.b16 %v1754
    %v1852 = vunpack.c.l.b16 %v1755
    %v1853 = vunpack.c.h.b16 %v1755
    %v1854 = vunpack.c.l.b16 %v1756
    %v1855 = vunpack.c.h.b16 %v1756
    %v1856 = vunpack.c.l.b16 %v1757
    %v1857 = vunpack.c.h.b16 %v1757
    %v1858 = vunpack.c.l.b16 %v1758
    %v1859 = vunpack.c.h.b16 %v1758
    %v1860 = vunpack.c.l.b16 %v1759
    %v1861 = vunpack.c.h.b16 %v1759
    %v1862 = vunpack.c.l.b16 %v1760
    %v1863 = vunpack.c.h.b16 %v1760
    %v1864 = vunpack.c.l.b16 %v1761
    %v1865 = vunpack.c.h.b16 %v1761
    %v1866 = vunpack.c.l.b16 %v1762
    %v1867 = vunpack.c.h.b16 %v1762
    %v1868 = vunpack.c.l.b16 %v1763
    %v1869 = vunpack.c.h.b16 %v1763
    %v1870 = vunpack.c.l.b16 %v1764
    %v1871 = vunpack.c.h.b16 %v1764
    %v1872 = vunpack.c.l.b16 %v1765
    %v1873 = vunpack.c.h.b16 %v1765
    %v1874 = vunpack.c.l.b16 %v1766
    %v1875 = vunpack.c.h.b16 %v1766
    %v1876 = vpack.c.b16 %v1814, %v1812
    %v1877 = vpack.c.b16 %v1815, %v1813
    %v1878 = vpack.c.b16 %v1818, %v1816
    %v1879 = vpack.c.b16 %v1819, %v1817
    %v1880 = vpack.c.b16 %v1822, %v1820
    %v1881 = vpack.c.b16 %v1823, %v1821
    %v1882 = vpack.c.b16 %v1826, %v1824
    %v1883 = vpack.c.b16 %v1827, %v1825
    %v1884 = vpack.c.b16 %v1830, %v1828
    %v1885 = vpack.c.b16 %v1831, %v1829
    %v1886 = vpack.c.b16 %v1834, %v1832
    %v1887 = vpack.c.b16 %v1835, %v1833
    %v1888 = vpack.c.b16 %v1838, %v1836
    %v1889 = vpack.c.b16 %v1839, %v1837
    %v1890 = vpack.c.b16 %v1842, %v1840
    %v1891 = vpack.c.b16 %v1843, %v1841
    %v1892 = vpack.c.b16 %v1846, %v1844
    %v1893 = vpack.c.b16 %v1847, %v1845
    %v1894 = vpack.c.b16 %v1850, %v1848
    %v1895 = vpack.c.b16 %v1851, %v1849
    %v1896 = vpack.c.b16 %v1854, %v1852
    %v1897 = vpack.c.b16 %v1855, %v1853
    %v1898 = vpack.c.b16 %v1858, %v1856
    %v1899 = vpack.c.b16 %v1859, %v1857
    %v1900 = vpack.c.b16 %v1862, %v1860
    %v1901 = vpack.c.b16 %v1863, %v1861
    %v1902 = vpack.c.b16 %v1866, %v1864
    %v1903 = vpack.c.b16 %v1867, %v1865
    %v1904 = vpack.c.b16 %v1870, %v1868
    %v1905 = vpack.c.b16 %v1871, %v1869
    %v1906 = vpack.c.b16 %v1874, %v1872
    %v1907 = vpack.c.b16 %v1875, %v1873
    %1940 = vmatprep.subr.bf16.mxu0 %v1877
    %1941 = vmatpush1.bf16.msra.mxu0 %v1876
    %1942 = vmatprep.subr.bf16.mxu0 %v1879
    %1943 = vmatpush1.bf16.msra.mxu0 %v1878
    %1944 = vmatprep.subr.bf16.mxu0 %v1881
    %1945 = vmatpush1.bf16.msra.mxu0 %v1880
    %1946 = vmatprep.subr.bf16.mxu0 %v1883
    %1947 = vmatpush1.bf16.msra.mxu0 %v1882
    %1948 = vmatprep.subr.bf16.mxu0 %v1885
    %1949 = vmatpush1.bf16.msra.mxu0 %v1884
    %1950 = vmatprep.subr.bf16.mxu0 %v1887
    %1951 = vmatpush1.bf16.msra.mxu0 %v1886
    %1952 = vmatprep.subr.bf16.mxu0 %v1889
    %1953 = vmatpush1.bf16.msra.mxu0 %v1888
    %1954 = vmatprep.subr.bf16.mxu0 %v1891
    %1955 = vmatpush1.bf16.msra.mxu0 %v1890
    %1956 = vmatprep.subr.bf16.mxu0 %v1893
    %1957 = vmatpush1.bf16.msra.mxu0 %v1892
    %1958 = vmatprep.subr.bf16.mxu0 %v1895
    %1959 = vmatpush1.bf16.msra.mxu0 %v1894
    %1960 = vmatprep.subr.bf16.mxu0 %v1897
    %1961 = vmatpush1.bf16.msra.mxu0 %v1896
    %1962 = vmatprep.subr.bf16.mxu0 %v1899
    %1963 = vmatpush1.bf16.msra.mxu0 %v1898
    %1964 = vmatprep.subr.bf16.mxu0 %v1901
    %1965 = vmatpush1.bf16.msra.mxu0 %v1900
    %1966 = vmatprep.subr.bf16.mxu0 %v1903
    %1967 = vmatpush1.bf16.msra.mxu0 %v1902
    %1968 = vmatprep.subr.bf16.mxu0 %v1905
    %1969 = vmatpush1.bf16.msra.mxu0 %v1904
    %1970 = vmatprep.subr.bf16.mxu0 %v1907
    %1971 = vmatpush1.bf16.msra.mxu0 %v1906
    %1972 = vmatprep.mubr.bf16.mxu0 %v1727
    %1973 = vmatmul.mubr.bf16.gmra.mrb[0].mxu0 %v1726
    %v1974 = vpop.f32.mrb[0].mxu0
    %v1975 = vadd.f32 %v1773, %v1974
    %v1976 = vpop.f32.mrb[0].mxu0
    %v1977 = vadd.f32 %v1777, %v1976
    %v1978 = vpop.f32.mrb[0].mxu0
    %v1979 = vadd.f32 %v1773, %v1978
    %v1980 = vpop.f32.mrb[0].mxu0
    %v1981 = vadd.f32 %v1777, %v1980
    %1982 = vmatprep.mubr.bf16.mxu0 %v1729
    %1983 = vmatmul.mubr.bf16.gmra.mrb[0].mxu0 %v1728
    %v1984 = vpop.f32.mrb[0].mxu0
    %v1985 = vadd.f32 %v1773, %v1984
    %v1986 = vpop.f32.mrb[0].mxu0
    %v1987 = vadd.f32 %v1777, %v1986
    %v1988 = vpop.f32.mrb[0].mxu0
    %v1989 = vadd.f32 %v1773, %v1988
    %v1990 = vpop.f32.mrb[0].mxu0
    %v1991 = vadd.f32 %v1777, %v1990
    %1992 = vmatprep.mubr.bf16.mxu0 %v1731
    %1993 = vmatmul.mubr.bf16.gmra.mrb[0].mxu0 %v1730
    %v1994 = vpop.f32.mrb[0].mxu0
    %v1995 = vadd.f32 %v1773, %v1994
    %v1996 = vpop.f32.mrb[0].mxu0
    %v1997 = vadd.f32 %v1777, %v1996
    %v1998 = vpop.f32.mrb[0].mxu0
    %v1999 = vadd.f32 %v1773, %v1998
    %v2000 = vpop.f32.mrb[0].mxu0
    %v2001 = vadd.f32 %v1777, %v2000
    %2002 = vmatprep.mubr.bf16.mxu0 %v1733
    %2003 = vmatmul.mubr.bf16.gmra.mrb[0].mxu0 %v1732
    %v2004 = vpop.f32.mrb[0].mxu0
    %v2005 = vadd.f32 %v1773, %v2004
    %v2006 = vpop.f32.mrb[0].mxu0
    %v2007 = vadd.f32 %v1777, %v2006
    %v2008 = vpop.f32.mrb[0].mxu0
    %v2009 = vadd.f32 %v1773, %v2008
    %v2010 = vpop.f32.mrb[0].mxu0
    %v2011 = vadd.f32 %v1777, %v2010
    %2012 = vdwg.mxu0
    %s2013 = scalar_lea.vmem %s5, 19
    %v2014 = vld [vmem:[%s2013] ss:$8 sm:$0x3]
    %s2015 = scalar_lea.vmem %s5, 20
    %v2016 = vld [vmem:[%s2015] ss:$8 sm:$0x3]
    %v2017 = vadd.f32 %v1975, %v1979
    %v2018 = vadd.f32 %v2017, %v1985
    %v2019 = vadd.f32 %v2018, %v1989
    %v2020 = vadd.f32 %v2019, %v1995
    %v2021 = vadd.f32 %v2020, %v1999
    %v2022 = vadd.f32 %v2021, %v2005
    %v2023 = vadd.f32 %v2022, %v2009
    %v2024 = vrot.slane %v2023, 4
    %v2025 = vadd.f32 %v2023, %v2024
    %v2026 = vrot.slane %v2025, 2
    %v2027 = vadd.f32 %v2025, %v2026
    %v2028 = vrot.slane %v2027, 1
    %v2029 = vadd.f32 %v2027, %v2028
    %v2030 = vadd.f32 %v1977, %v1981
    %v2031 = vadd.f32 %v2030, %v1987
    %v2032 = vadd.f32 %v2031, %v1991
    %v2033 = vadd.f32 %v2032, %v1997
    %v2034 = vadd.f32 %v2033, %v2001
    %v2035 = vadd.f32 %v2034, %v2007
    %v2036 = vadd.f32 %v2035, %v2011
    %v2037 = vrot.slane %v2036, 4
    %v2038 = vadd.f32 %v2036, %v2037
    %v2039 = vrot.slane %v2038, 2
    %v2040 = vadd.f32 %v2038, %v2039
    %v2041 = vrot.slane %v2040, 1
    %v2042 = vadd.f32 %v2040, %v2041
    %v2043 = vmul.f32 %v2029, %v500
    %v2044 = vmul.f32 %v2042, %v500
    %v2045 = vsub.f32 %v1975, %v2043
    %v2046 = vsub.f32 %v1977, %v2044
    %v2047 = vsub.f32 %v1979, %v2043
    %v2048 = vsub.f32 %v1981, %v2044
    %v2049 = vsub.f32 %v1985, %v2043
    %v2050 = vsub.f32 %v1987, %v2044
    %v2051 = vsub.f32 %v1989, %v2043
    %v2052 = vsub.f32 %v1991, %v2044
    %v2053 = vsub.f32 %v1995, %v2043
    %v2054 = vsub.f32 %v1997, %v2044
    %v2055 = vsub.f32 %v1999, %v2043
    %v2056 = vsub.f32 %v2001, %v2044
    %v2057 = vsub.f32 %v2005, %v2043
    %v2058 = vsub.f32 %v2007, %v2044
    %v2059 = vsub.f32 %v2009, %v2043
    %v2060 = vsub.f32 %v2011, %v2044
    %v2061 = vmul.f32 %v2045, %v2045
    %v2062 = vmul.f32 %v2046, %v2046
    %v2063 = vmul.f32 %v2047, %v2047
    %v2064 = vmul.f32 %v2048, %v2048
    %v2065 = vmul.f32 %v2049, %v2049
    %v2066 = vmul.f32 %v2050, %v2050
    %v2067 = vmul.f32 %v2051, %v2051
    %v2068 = vmul.f32 %v2052, %v2052
    %v2069 = vmul.f32 %v2053, %v2053
    %v2070 = vmul.f32 %v2054, %v2054
    %v2071 = vmul.f32 %v2055, %v2055
    %v2072 = vmul.f32 %v2056, %v2056
    %v2073 = vmul.f32 %v2057, %v2057
    %v2074 = vmul.f32 %v2058, %v2058
    %v2075 = vmul.f32 %v2059, %v2059
    %v2076 = vmul.f32 %v2060, %v2060
    %v2077 = vadd.f32 %v2061, %v2063
    %v2078 = vadd.f32 %v2077, %v2065
    %v2079 = vadd.f32 %v2078, %v2067
    %v2080 = vadd.f32 %v2079, %v2069
    %v2081 = vadd.f32 %v2080, %v2071
    %v2082 = vadd.f32 %v2081, %v2073
    %v2083 = vadd.f32 %v2082, %v2075
    %v2084 = vrot.slane %v2083, 4
    %v2085 = vadd.f32 %v2083, %v2084
    %v2086 = vrot.slane %v2085, 2
    %v2087 = vadd.f32 %v2085, %v2086
    %v2088 = vrot.slane %v2087, 1
    %v2089 = vadd.f32 %v2087, %v2088
    %v2090 = vadd.f32 %v2062, %v2064
    %v2091 = vadd.f32 %v2090, %v2066
    %v2092 = vadd.f32 %v2091, %v2068
    %v2093 = vadd.f32 %v2092, %v2070
    %v2094 = vadd.f32 %v2093, %v2072
    %v2095 = vadd.f32 %v2094, %v2074
    %v2096 = vadd.f32 %v2095, %v2076
    %v2097 = vrot.slane %v2096, 4
    %v2098 = vadd.f32 %v2096, %v2097
    %v2099 = vrot.slane %v2098, 2
    %v2100 = vadd.f32 %v2098, %v2099
    %v2101 = vrot.slane %v2100, 1
    %v2102 = vadd.f32 %v2100, %v2101
    %v2103 = vmul.f32 %v2089, %v500
    %v2104 = vmul.f32 %v2102, %v500
    %v2105 = vadd.f32 %v2103, 1e-05
    %v2106 = vadd.f32 %v2104, 1e-05
    %v2107 = vrsqrt.pop %v2105
    %v2108 = vrsqrt.pop %v2106
    %v2111 = vcombine.low %v2107, %v2108
    %v2113 = vunpack.c.l.s4 1966171168
    %v2114 = vunpack.c.0.s8 %v2113
    %v2115 = vlaneseq
    %v2116 = vshrl.u32 %v2115, 7
    %v2117 = vsub.s32 %v2114, %v2116
    %v2118 = vrot.slane %v2111, %v2117
    %v2120 = vunpack.c.l.s4 1966171168
    %v2121 = vunpack.c.0.s8 %v2120
    %v2122 = vlaneseq
    %v2123 = vshrl.u32 %v2122, 7
    %v2124 = vsub.s32 %v2121, %v2123
    %v2125 = vrot.slane %v2118, %v2124
    %v2127 = vmul.f32 %v2014, %v2125
    %v2129 = vlaneseq
    %v2130 = vshrl.u32 %v2129, 7
    %v2131 = vsub.s32 0, %v2130
    %v2132 = vrot.slane %v2127, %v2131
    %v2133 = vlaneseq
    %v2134 = vshrl.u32 %v2133, 7
    %v2135 = vsub.s32 1, %v2134
    %v2136 = vrot.slane %v2127, %v2135
    %v2139 = vmul.f32 %v2043, %v2132
    %v2140 = vmul.f32 %v2044, %v2136
    %v2143 = vcombine.low %v2139, %v2140
    %v2145 = vunpack.c.l.s4 1966171168
    %v2146 = vunpack.c.0.s8 %v2145
    %v2147 = vlaneseq
    %v2148 = vshrl.u32 %v2147, 7
    %v2149 = vsub.s32 %v2146, %v2148
    %v2150 = vrot.slane %v2143, %v2149
    %v2152 = vunpack.c.l.s4 1966171168
    %v2153 = vunpack.c.0.s8 %v2152
    %v2154 = vlaneseq
    %v2155 = vshrl.u32 %v2154, 7
    %v2156 = vsub.s32 %v2153, %v2155
    %v2157 = vrot.slane %v2150, %v2156
    %v2159 = vsub.f32 %v2016, %v2157
    %v2160 = vmul.f32 %v1975, %v2132
    %v2161 = vmul.f32 %v1977, %v2136
    %v2162 = vmul.f32 %v1979, %v2132
    %v2163 = vmul.f32 %v1981, %v2136
    %v2164 = vmul.f32 %v1985, %v2132
    %v2165 = vmul.f32 %v1987, %v2136
    %v2166 = vmul.f32 %v1989, %v2132
    %v2167 = vmul.f32 %v1991, %v2136
    %v2168 = vmul.f32 %v1995, %v2132
    %v2169 = vmul.f32 %v1997, %v2136
    %v2170 = vmul.f32 %v1999, %v2132
    %v2171 = vmul.f32 %v2001, %v2136
    %v2172 = vmul.f32 %v2005, %v2132
    %v2173 = vmul.f32 %v2007, %v2136
    %v2174 = vmul.f32 %v2009, %v2132
    %v2175 = vmul.f32 %v2011, %v2136
    %v2177 = vlaneseq
    %v2178 = vshrl.u32 %v2177, 7
    %v2179 = vsub.s32 0, %v2178
    %v2180 = vrot.slane %v2159, %v2179
    %v2181 = vlaneseq
    %v2182 = vshrl.u32 %v2181, 7
    %v2183 = vsub.s32 1, %v2182
    %v2184 = vrot.slane %v2159, %v2183
    %v2187 = vadd.f32 %v2160, %v2180
    %v2188 = vadd.f32 %v2161, %v2184
    %v2189 = vadd.f32 %v2162, %v2180
    %v2190 = vadd.f32 %v2163, %v2184
    %v2191 = vadd.f32 %v2164, %v2180
    %v2192 = vadd.f32 %v2165, %v2184
    %v2193 = vadd.f32 %v2166, %v2180
    %v2194 = vadd.f32 %v2167, %v2184
    %v2195 = vadd.f32 %v2168, %v2180
    %v2196 = vadd.f32 %v2169, %v2184
    %v2197 = vadd.f32 %v2170, %v2180
    %v2198 = vadd.f32 %v2171, %v2184
    %v2199 = vadd.f32 %v2172, %v2180
    %v2200 = vadd.f32 %v2173, %v2184
    %v2201 = vadd.f32 %v2174, %v2180
    %v2202 = vadd.f32 %v2175, %v2184
    %v2203 = vunpack.c.l.bf16 %v1726
    %v2204 = vunpack.c.l.bf16 %v1727
    %v2205 = vunpack.c.h.bf16 %v1726
    %v2206 = vunpack.c.h.bf16 %v1727
    %v2207 = vunpack.c.l.bf16 %v1728
    %v2208 = vunpack.c.l.bf16 %v1729
    %v2209 = vunpack.c.h.bf16 %v1728
    %v2210 = vunpack.c.h.bf16 %v1729
    %v2211 = vunpack.c.l.bf16 %v1730
    %v2212 = vunpack.c.l.bf16 %v1731
    %v2213 = vunpack.c.h.bf16 %v1730
    %v2214 = vunpack.c.h.bf16 %v1731
    %v2215 = vunpack.c.l.bf16 %v1732
    %v2216 = vunpack.c.l.bf16 %v1733
    %v2217 = vunpack.c.h.bf16 %v1732
    %v2218 = vunpack.c.h.bf16 %v1733
    %v2219 = vadd.f32 %v2187, %v2203
    %v2220 = vadd.f32 %v2188, %v2204
    %v2221 = vadd.f32 %v2189, %v2205
    %v2222 = vadd.f32 %v2190, %v2206
    %v2223 = vadd.f32 %v2191, %v2207
    %v2224 = vadd.f32 %v2192, %v2208
    %v2225 = vadd.f32 %v2193, %v2209
    %v2226 = vadd.f32 %v2194, %v2210
    %v2227 = vadd.f32 %v2195, %v2211
    %v2228 = vadd.f32 %v2196, %v2212
    %v2229 = vadd.f32 %v2197, %v2213
    %v2230 = vadd.f32 %v2198, %v2214
    %v2231 = vadd.f32 %v2199, %v2215
    %v2232 = vadd.f32 %v2200, %v2216
    %v2233 = vadd.f32 %v2201, %v2217
    %v2234 = vadd.f32 %v2202, %v2218
    %v2235 = vmax.f32 %v2219, 0.0
    %v2236 = vmax.f32 %v2220, 0.0
    %v2237 = vmax.f32 %v2221, 0.0
    %v2238 = vmax.f32 %v2222, 0.0
    %v2239 = vmax.f32 %v2223, 0.0
    %v2240 = vmax.f32 %v2224, 0.0
    %v2241 = vmax.f32 %v2225, 0.0
    %v2242 = vmax.f32 %v2226, 0.0
    %v2243 = vmax.f32 %v2227, 0.0
    %v2244 = vmax.f32 %v2228, 0.0
    %v2245 = vmax.f32 %v2229, 0.0
    %v2246 = vmax.f32 %v2230, 0.0
    %v2247 = vmax.f32 %v2231, 0.0
    %v2248 = vmax.f32 %v2232, 0.0
    %v2249 = vmax.f32 %v2233, 0.0
    %v2250 = vmax.f32 %v2234, 0.0
    %v2251 = vpack.c.bf16 %v2237, %v2235
    %v2252 = vpack.c.bf16 %v2238, %v2236
    %v2253 = vpack.c.bf16 %v2241, %v2239
    %v2254 = vpack.c.bf16 %v2242, %v2240
    %v2255 = vpack.c.bf16 %v2245, %v2243
    %v2256 = vpack.c.bf16 %v2246, %v2244
    %v2257 = vpack.c.bf16 %v2249, %v2247
    %v2258 = vpack.c.bf16 %v2250, %v2248
    %v2259 = vld [vmem:[%s4] sm:$0xf]
    %v2260 = vld [vmem:[%s4 + $0x4] sm:$0xf]
    %v2261 = vld [vmem:[%s4 + $0x8] sm:$0xf]
    %v2262 = vld [vmem:[%s4 + $0xc] sm:$0xf]
    %v2263 = vld [vmem:[%s4 + $0x10] sm:$0xf]
    %v2264 = vld [vmem:[%s4 + $0x14] sm:$0xf]
    %v2265 = vld [vmem:[%s4 + $0x18] sm:$0xf]
    %v2266 = vld [vmem:[%s4 + $0x1c] sm:$0xf]
    %v2267 = vld [vmem:[%s4 + $0x20] sm:$0xf]
    %v2268 = vld [vmem:[%s4 + $0x24] sm:$0xf]
    %v2269 = vld [vmem:[%s4 + $0x28] sm:$0xf]
    %v2270 = vld [vmem:[%s4 + $0x2c] sm:$0xf]
    %v2271 = vld [vmem:[%s4 + $0x30] sm:$0xf]
    %v2272 = vld [vmem:[%s4 + $0x34] sm:$0xf]
    %v2273 = vld [vmem:[%s4 + $0x38] sm:$0xf]
    %v2274 = vld [vmem:[%s4 + $0x3c] sm:$0xf]
    %v2275 = vld [vmem:[%s4 + $0x40] sm:$0xf]
    %v2276 = vld [vmem:[%s4 + $0x44] sm:$0xf]
    %v2277 = vld [vmem:[%s4 + $0x48] sm:$0xf]
    %v2278 = vld [vmem:[%s4 + $0x4c] sm:$0xf]
    %v2279 = vld [vmem:[%s4 + $0x50] sm:$0xf]
    %v2280 = vld [vmem:[%s4 + $0x54] sm:$0xf]
    %v2281 = vld [vmem:[%s4 + $0x58] sm:$0xf]
    %v2282 = vld [vmem:[%s4 + $0x5c] sm:$0xf]
    %v2283 = vld [vmem:[%s4 + $0x60] sm:$0xf]
    %v2284 = vld [vmem:[%s4 + $0x64] sm:$0xf]
    %v2285 = vld [vmem:[%s4 + $0x68] sm:$0xf]
    %v2286 = vld [vmem:[%s4 + $0x6c] sm:$0xf]
    %v2287 = vld [vmem:[%s4 + $0x70] sm:$0xf]
    %v2288 = vld [vmem:[%s4 + $0x74] sm:$0xf]
    %v2289 = vld [vmem:[%s4 + $0x78] sm:$0xf]
    %v2290 = vld [vmem:[%s4 + $0x7c] sm:$0xf]
    %v2291 = vld [vmem:[%s5 + $0x15] ss:$0 sm:$0xff]
    %v2324 = vunpack.c.l.b16 %v2259
    %v2325 = vunpack.c.l.b16 %v2260
    %v2326 = vunpack.c.l.b16 %v2261
    %v2327 = vunpack.c.l.b16 %v2262
    %v2328 = vunpack.c.l.b16 %v2263
    %v2329 = vunpack.c.l.b16 %v2264
    %v2330 = vunpack.c.l.b16 %v2265
    %v2331 = vunpack.c.l.b16 %v2266
    %v2332 = vunpack.c.l.b16 %v2267
    %v2333 = vunpack.c.l.b16 %v2268
    %v2334 = vunpack.c.l.b16 %v2269
    %v2335 = vunpack.c.l.b16 %v2270
    %v2336 = vunpack.c.l.b16 %v2271
    %v2337 = vunpack.c.l.b16 %v2272
    %v2338 = vunpack.c.l.b16 %v2273
    %v2339 = vunpack.c.l.b16 %v2274
    %v2340 = vunpack.c.l.b16 %v2275
    %v2341 = vunpack.c.l.b16 %v2276
    %v2342 = vunpack.c.l.b16 %v2277
    %v2343 = vunpack.c.l.b16 %v2278
    %v2344 = vunpack.c.l.b16 %v2279
    %v2345 = vunpack.c.l.b16 %v2280
    %v2346 = vunpack.c.l.b16 %v2281
    %v2347 = vunpack.c.l.b16 %v2282
    %v2348 = vunpack.c.l.b16 %v2283
    %v2349 = vunpack.c.l.b16 %v2284
    %v2350 = vunpack.c.l.b16 %v2285
    %v2351 = vunpack.c.l.b16 %v2286
    %v2352 = vunpack.c.l.b16 %v2287
    %v2353 = vunpack.c.l.b16 %v2288
    %v2354 = vunpack.c.l.b16 %v2289
    %v2355 = vunpack.c.l.b16 %v2290
    %v2356 = vpack.c.b16 %v2325, %v2324
    %v2357 = vpack.c.b16 %v2327, %v2326
    %v2358 = vpack.c.b16 %v2329, %v2328
    %v2359 = vpack.c.b16 %v2331, %v2330
    %v2360 = vpack.c.b16 %v2333, %v2332
    %v2361 = vpack.c.b16 %v2335, %v2334
    %v2362 = vpack.c.b16 %v2337, %v2336
    %v2363 = vpack.c.b16 %v2339, %v2338
    %v2364 = vpack.c.b16 %v2341, %v2340
    %v2365 = vpack.c.b16 %v2343, %v2342
    %v2366 = vpack.c.b16 %v2345, %v2344
    %v2367 = vpack.c.b16 %v2347, %v2346
    %v2368 = vpack.c.b16 %v2349, %v2348
    %v2369 = vpack.c.b16 %v2351, %v2350
    %v2370 = vpack.c.b16 %v2353, %v2352
    %v2371 = vpack.c.b16 %v2355, %v2354
    %2388 = vmatprep.subr.bf16.mxu0 0
    %2389 = vmatpush1.bf16.msra.mxu0 %v2356
    %2390 = vmatprep.subr.bf16.mxu0 0
    %2391 = vmatpush1.bf16.msra.mxu0 %v2357
    %2392 = vmatprep.subr.bf16.mxu0 0
    %2393 = vmatpush1.bf16.msra.mxu0 %v2358
    %2394 = vmatprep.subr.bf16.mxu0 0
    %2395 = vmatpush1.bf16.msra.mxu0 %v2359
    %2396 = vmatprep.subr.bf16.mxu0 0
    %2397 = vmatpush1.bf16.msra.mxu0 %v2360
    %2398 = vmatprep.subr.bf16.mxu0 0
    %2399 = vmatpush1.bf16.msra.mxu0 %v2361
    %2400 = vmatprep.subr.bf16.mxu0 0
    %2401 = vmatpush1.bf16.msra.mxu0 %v2362
    %2402 = vmatprep.subr.bf16.mxu0 0
    %2403 = vmatpush1.bf16.msra.mxu0 %v2363
    %2404 = vmatprep.subr.bf16.mxu0 0
    %2405 = vmatpush1.bf16.msra.mxu0 %v2364
    %2406 = vmatprep.subr.bf16.mxu0 0
    %2407 = vmatpush1.bf16.msra.mxu0 %v2365
    %2408 = vmatprep.subr.bf16.mxu0 0
    %2409 = vmatpush1.bf16.msra.mxu0 %v2366
    %2410 = vmatprep.subr.bf16.mxu0 0
    %2411 = vmatpush1.bf16.msra.mxu0 %v2367
    %2412 = vmatprep.subr.bf16.mxu0 0
    %2413 = vmatpush1.bf16.msra.mxu0 %v2368
    %2414 = vmatprep.subr.bf16.mxu0 0
    %2415 = vmatpush1.bf16.msra.mxu0 %v2369
    %2416 = vmatprep.subr.bf16.mxu0 0
    %2417 = vmatpush1.bf16.msra.mxu0 %v2370
    %2418 = vmatprep.subr.bf16.mxu0 0
    %2419 = vmatpush1.bf16.msra.mxu0 %v2371
    %2420 = vmatprep.mubr.bf16.mxu0 %v2252
    %2421 = vmatmul.mubr.bf16.gmra.mrb[0].mxu0 %v2251
    %v2422 = vpop.f32.mrb[0].mxu0
    %v2423 = vadd.f32 %v2291, %v2422
    %v2424 = vpop.f32.mrb[0].mxu0
    %v2425 = vpop.f32.mrb[0].mxu0
    %v2426 = vadd.f32 %v2291, %v2425
    %v2427 = vpop.f32.mrb[0].mxu0
    %2428 = vmatprep.mubr.bf16.mxu0 %v2254
    %2429 = vmatmul.mubr.bf16.gmra.mrb[0].mxu0 %v2253
    %v2430 = vpop.f32.mrb[0].mxu0
    %v2431 = vadd.f32 %v2291, %v2430
    %v2432 = vpop.f32.mrb[0].mxu0
    %v2433 = vpop.f32.mrb[0].mxu0
    %v2434 = vadd.f32 %v2291, %v2433
    %v2435 = vpop.f32.mrb[0].mxu0
    %2436 = vmatprep.mubr.bf16.mxu0 %v2256
    %2437 = vmatmul.mubr.bf16.gmra.mrb[0].mxu0 %v2255
    %v2438 = vpop.f32.mrb[0].mxu0
    %v2439 = vadd.f32 %v2291, %v2438
    %v2440 = vpop.f32.mrb[0].mxu0
    %v2441 = vpop.f32.mrb[0].mxu0
    %v2442 = vadd.f32 %v2291, %v2441
    %v2443 = vpop.f32.mrb[0].mxu0
    %2444 = vmatprep.mubr.bf16.mxu0 %v2258
    %2445 = vmatmul.mubr.bf16.gmra.mrb[0].mxu0 %v2257
    %v2446 = vpop.f32.mrb[0].mxu0
    %v2447 = vadd.f32 %v2291, %v2446
    %v2448 = vpop.f32.mrb[0].mxu0
    %v2449 = vpop.f32.mrb[0].mxu0
    %v2450 = vadd.f32 %v2291, %v2449
    %v2451 = vpop.f32.mrb[0].mxu0
    %2452 = vdwg.mxu0
    %v2453 = vld [vmem:[%s5 + $0x16] ss:$0 sm:$0xff]
    %v2454 = vld [vmem:[%s5 + $0x17] ss:$0 sm:$0xff]
    %v2455 = vadd.f32 %v2423, %v2426
    %v2456 = vadd.f32 %v2455, %v2431
    %v2457 = vadd.f32 %v2456, %v2434
    %v2458 = vadd.f32 %v2457, %v2439
    %v2459 = vadd.f32 %v2458, %v2442
    %v2460 = vadd.f32 %v2459, %v2447
    %v2461 = vadd.f32 %v2460, %v2450
    %v2462 = vrot.slane %v2461, 4
    %v2463 = vadd.f32 %v2461, %v2462
    %v2464 = vrot.slane %v2463, 2
    %v2465 = vadd.f32 %v2463, %v2464
    %v2466 = vrot.slane %v2465, 1
    %v2467 = vadd.f32 %v2465, %v2466
    %v2468 = vmul.f32 %v2467, %v500
    %v2469 = vsub.f32 %v2423, %v2468
    %v2470 = vsub.f32 %v2426, %v2468
    %v2471 = vsub.f32 %v2431, %v2468
    %v2472 = vsub.f32 %v2434, %v2468
    %v2473 = vsub.f32 %v2439, %v2468
    %v2474 = vsub.f32 %v2442, %v2468
    %v2475 = vsub.f32 %v2447, %v2468
    %v2476 = vsub.f32 %v2450, %v2468
    %v2477 = vmul.f32 %v2469, %v2469
    %v2478 = vmul.f32 %v2470, %v2470
    %v2479 = vmul.f32 %v2471, %v2471
    %v2480 = vmul.f32 %v2472, %v2472
    %v2481 = vmul.f32 %v2473, %v2473
    %v2482 = vmul.f32 %v2474, %v2474
    %v2483 = vmul.f32 %v2475, %v2475
    %v2484 = vmul.f32 %v2476, %v2476
    %v2485 = vadd.f32 %v2477, %v2478
    %v2486 = vadd.f32 %v2485, %v2479
    %v2487 = vadd.f32 %v2486, %v2480
    %v2488 = vadd.f32 %v2487, %v2481
    %v2489 = vadd.f32 %v2488, %v2482
    %v2490 = vadd.f32 %v2489, %v2483
    %v2491 = vadd.f32 %v2490, %v2484
    %v2492 = vrot.slane %v2491, 4
    %v2493 = vadd.f32 %v2491, %v2492
    %v2494 = vrot.slane %v2493, 2
    %v2495 = vadd.f32 %v2493, %v2494
    %v2496 = vrot.slane %v2495, 1
    %v2497 = vadd.f32 %v2495, %v2496
    %v2498 = vmul.f32 %v2497, %v500
    %v2499 = vadd.f32 %v2498, 1e-05
    %v2500 = vrsqrt.pop %v2499
    %v2501 = vmul.f32 %v2453, %v2500
    %v2502 = vmul.f32 %v2468, %v2501
    %v2503 = vsub.f32 %v2454, %v2502
    %v2504 = vmul.f32 %v2423, %v2501
    %v2505 = vmul.f32 %v2426, %v2501
    %v2506 = vmul.f32 %v2431, %v2501
    %v2507 = vmul.f32 %v2434, %v2501
    %v2508 = vmul.f32 %v2439, %v2501
    %v2509 = vmul.f32 %v2442, %v2501
    %v2510 = vmul.f32 %v2447, %v2501
    %v2511 = vmul.f32 %v2450, %v2501
    %v2512 = vadd.f32 %v2504, %v2503
    %v2513 = vadd.f32 %v2505, %v2503
    %v2514 = vadd.f32 %v2506, %v2503
    %v2515 = vadd.f32 %v2507, %v2503
    %v2516 = vadd.f32 %v2508, %v2503
    %v2517 = vadd.f32 %v2509, %v2503
    %v2518 = vadd.f32 %v2510, %v2503
    %v2519 = vadd.f32 %v2511, %v2503
    %v2520 = vmax.f32 %v2512, 0.0
    %v2521 = vmax.f32 %v2513, 0.0
    %v2522 = vmax.f32 %v2514, 0.0
    %v2523 = vmax.f32 %v2515, 0.0
    %v2524 = vmax.f32 %v2516, 0.0
    %v2525 = vmax.f32 %v2517, 0.0
    %v2526 = vmax.f32 %v2518, 0.0
    %v2527 = vmax.f32 %v2519, 0.0
    %v2528 = vld [vmem:[%s5 + $0x20] ss:$0 sm:$0xff]
    %v2529 = vmul.f32 %v2520, %v2528
    %v2530 = vmul.f32 %v2521, %v2528
    %v2531 = vmul.f32 %v2522, %v2528
    %v2532 = vmul.f32 %v2523, %v2528
    %v2533 = vmul.f32 %v2524, %v2528
    %v2534 = vmul.f32 %v2525, %v2528
    %v2535 = vmul.f32 %v2526, %v2528
    %v2536 = vmul.f32 %v2527, %v2528
    %2537 = vadd.xlane.f32.xlu0 %v2529
    %v2538 = vpop.xlane.xlu0 %2537
    %2539 = vadd.xlane.f32.xlu0 %v2530
    %v2540 = vpop.xlane.xlu0 %2539
    %2541 = vadd.xlane.f32.xlu0 %v2531
    %v2542 = vpop.xlane.xlu0 %2541
    %2543 = vadd.xlane.f32.xlu0 %v2532
    %v2544 = vpop.xlane.xlu0 %2543
    %2545 = vadd.xlane.f32.xlu0 %v2533
    %v2546 = vpop.xlane.xlu0 %2545
    %2547 = vadd.xlane.f32.xlu0 %v2534
    %v2548 = vpop.xlane.xlu0 %2547
    %2549 = vadd.xlane.f32.xlu0 %v2535
    %v2550 = vpop.xlane.xlu0 %2549
    %2551 = vadd.xlane.f32.xlu0 %v2536
    %v2552 = vpop.xlane.xlu0 %2551
    %v2553 = vld [vmem:[%s5 + $0x21] ss:$0 sm:$0xff]
    %v2554 = vadd.f32 %v2538, %v2553
    %v2555 = vadd.f32 %v2540, %v2553
    %v2556 = vadd.f32 %v2542, %v2553
    %v2557 = vadd.f32 %v2544, %v2553
    %v2558 = vadd.f32 %v2546, %v2553
    %v2559 = vadd.f32 %v2548, %v2553
    %v2560 = vadd.f32 %v2550, %v2553
    %v2561 = vadd.f32 %v2552, %v2553
    %v2562 = vmax.f32 %v2554, 0.0
    %v2563 = vmax.f32 %v2555, 0.0
    %v2564 = vmax.f32 %v2556, 0.0
    %v2565 = vmax.f32 %v2557, 0.0
    %v2566 = vmax.f32 %v2558, 0.0
    %v2567 = vmax.f32 %v2559, 0.0
    %v2568 = vmax.f32 %v2560, 0.0
    %v2569 = vmax.f32 %v2561, 0.0
    %vm2570 = vcmask 7168
    %2571 = vst.msk [vmem:[%s6] sm:$0xff] %vm2570, %v2562
    %2572 = vst.msk [vmem:[%s6 + $0x8] sm:$0xff] %vm2570, %v2563
    %2573 = vst.msk [vmem:[%s6 + $0x10] sm:$0xff] %vm2570, %v2564
    %2574 = vst.msk [vmem:[%s6 + $0x18] sm:$0xff] %vm2570, %v2565
    %2575 = vst.msk [vmem:[%s6 + $0x20] sm:$0xff] %vm2570, %v2566
    %2576 = vst.msk [vmem:[%s6 + $0x28] sm:$0xff] %vm2570, %v2567
    %2577 = vst.msk [vmem:[%s6 + $0x30] sm:$0xff] %vm2570, %v2568
    %2578 = vst.msk [vmem:[%s6 + $0x38] sm:$0xff] %vm2570, %v2569
    // Predicated region
    $region34: #{respair_distance_train.1} parent=1 // pred_check
      _
    $region35: #{respair_distance_train.1} parent=1 // pred_check_branch
      %2580 = sbr.rel (0) target = $region37
    $region36: #{respair_distance_train.1} parent=1 // pred_region
      _
    $region37: #{respair_distance_train.1} parent=1 // pred_fallthru
      _
    // Predicated region
    $region38: #{respair_distance_train.1} parent=1 // pred_check
      _
    $region39: #{respair_distance_train.1} parent=1 // pred_check_branch
      %2582 = sbr.rel (0) target = $region41
    $region40: #{respair_distance_train.1} parent=1 // pred_region
      _
    $region41: #{respair_distance_train.1} parent=1 // pred_fallthru
      _
    %2583 = vsyncpa [#allocation3], 1
    %2584 = vsyncpa [#allocation5], 1

</llo_original>
